<compile_context>
chip_gen: v7x
topology: tpu7x:2x2x1
jax: 0.10.0
libtpu: 0.0.40
codegen_flags: <defaults>
</compile_context>

<pallas_src>
import functools

import jax
import jax.numpy as jnp
from jax import lax
from jax.experimental import pallas as pl
from jax.experimental.pallas import tpu as pltpu


# ---------------------------------------------------------------------------
# Fused kernel (one grid step per batch image)
#   x_ref  : (1, cin, H*W)    row-major pixels on lanes (free reshape of NCHW)
#   e_ref  : (H*W, N)         0/1 scatter: pixel q -> scanline col (q//W)*WP+(q%W)
#   et_ref : (N, H*W)         transpose of e (gathers valid scanline cols back)
#   k1_ref : (cout, k*k*cin)  forward-conv taps, columns ordered (kh, kw, ci)
#   k2_ref : (cin, k*k*cout)  T-scaled flipped taps, columns ordered (kh, kw, co)
#   b_ref  : (cout, 1)        bias
#   m_ref  : (1, N)           1.0 on valid scanline cols, 0.0 on pad cols
#   o_ref  : (1, cin, H*W)    output (x - conv_transpose(T*relu(conv(x)+b)))
# with WP = W + 2 (scanline row width incl. pad cols), N = H * WP.
# ---------------------------------------------------------------------------
def _sdpconv_kernel(x_ref, e_ref, et_ref, k1_ref, k2_ref, b_ref, m_ref, o_ref,
                    *, cin, cout, wp, n, k):
    offs = [kh * wp + kw for kh in range(k) for kw in range(k)]
    zpad = wp + 1                      # leading/trailing zero cols of the scanline

    x_rows = x_ref[0]                                                  # (cin, HW)

    # Scatter pixels into the zero-padded scanline layout.  One small MXU
    # matmul replaces jnp.pad + the lane<->sublane relayout im2col would need.
    x_line = jnp.dot(x_rows, e_ref[...],
                     preferred_element_type=jnp.float32)               # (cin, N)
    zx = jnp.zeros((cin, zpad), jnp.float32)
    x_full = jnp.concatenate([zx, x_line, zx], axis=1)                 # (cin, N+2*zpad)

    # ---- conv1 + bias + ReLU: ONE (cout, 9*cin) x (9*cin, N) matmul --------
    p1 = jnp.concatenate([x_full[:, o:o + n] for o in offs], axis=0)   # (9*cin, N)
    y = jnp.dot(k1_ref[...], p1, preferred_element_type=jnp.float32)   # (cout, N)
    y = jnp.maximum(y + b_ref[...], 0.0) * m_ref[...]   # ReLU; zero pad columns

    # ---- transpose conv (T folded into k2): ONE (cin, 9*cout) x (9*cout, N)
    zy = jnp.zeros((cout, zpad), jnp.float32)
    y_full = jnp.concatenate([zy, y, zy], axis=1)                      # (cout, N+2*zpad)
    p2 = jnp.concatenate([y_full[:, o:o + n] for o in offs], axis=0)   # (9*cout, N)
    res = jnp.dot(k2_ref[...], p2, preferred_element_type=jnp.float32)  # (cin, N)

    # ---- residual + gather back to dense row-major pixels ------------------
    diff = x_line - res                                                # (cin, N)
    o_ref[0] = jnp.dot(diff, et_ref[...],
                       preferred_element_type=jnp.float32).astype(o_ref.dtype)


# ---------------------------------------------------------------------------
# Wrapper: prep in plain XLA, layout plumbing is free reshapes only.
# ---------------------------------------------------------------------------
def sdpconv_forward(x, kernel, bias, q):
    cout, cin, k, _ = kernel.shape
    assert k == 3, "forward() hardcodes padding=1 => kernel_size=3 supported"
    b_, _, h, w = x.shape
    wp = w + 2                          # scanline row width (W + 2 pad columns)
    n = h * wp                          # scanline length
    hw = h * w
    kk = k * k

    kf = kernel.astype(jnp.float32)

    # ---- prep as plain XLA (~1e5 FLOPs, overlaps the kernel's first DMA) ---
    dn = ('NCHW', 'OIHW', 'NCHW')
    kkt = lax.conv_general_dilated(kf, kf, (1, 1), [(k - 1, k - 1)] * 2,
                                   dimension_numbers=dn)               # (cout,cout,5,5)
    q_abs = jnp.abs(q.astype(jnp.float32))
    t = 2.0 / (jnp.abs(q_abs[None, :, None, None] * kkt).sum((1, 2, 3)) / q_abs)

    # forward-conv taps, GEMM columns ordered (kh, kw, ci)
    k1 = jnp.transpose(kf, (0, 2, 3, 1)).reshape(cout, kk * cin)
    # conv_transpose2d(., K, padding=1) == conv2d(., flip+swap(K), padding=1);
    # fold T into the taps.  GEMM columns ordered (kh, kw, co).
    kt = jnp.transpose(kf[:, :, ::-1, ::-1], (1, 2, 3, 0))             # (cin,kh,kw,cout)
    k2 = (kt * t[None, None, None, :]).reshape(cin, kk * cout)

    b2 = bias.astype(jnp.float32).reshape(cout, 1)

    # constant 0/1 selection matrix: pixel q = h*W + w  ->  scanline col h*WP + w
    qi = jnp.arange(hw)
    col = (qi // w) * wp + (qi % w)
    e = (col[:, None] == jnp.arange(n)[None, :]).astype(jnp.float32)   # (HW, N)
    et = jnp.transpose(e)                                              # (N, HW)
    mask = (jnp.arange(n) % wp < w).astype(jnp.float32).reshape(1, n)  # valid cols

    # free, contiguous reshape of NCHW -- no transpose / pad HBM passes
    x_rows = x.astype(jnp.float32).reshape(b_, cin, hw)

    kernel_fn = functools.partial(_sdpconv_kernel, cin=cin, cout=cout,
                                  wp=wp, n=n, k=k)

    flops = 2 * b_ * (cin * hw * n          # scatter
                      + cout * kk * cin * n  # conv1
                      + cin * kk * cout * n  # transpose conv
                      + cin * n * hw)        # gather
    bytes_accessed = 4 * (x_rows.size + b_ * cin * hw + e.size + et.size
                          + k1.size + k2.size + b2.size + mask.size)

    out_rows = pl.pallas_call(
        kernel_fn,
        out_shape=jax.ShapeDtypeStruct((b_, cin, hw), jnp.float32),
        grid_spec=pltpu.PrefetchScalarGridSpec(
            num_scalar_prefetch=0,
            grid=(b_,),
            in_specs=[
                pl.BlockSpec((1, cin, hw), lambda b: (b, 0, 0)),
                pl.BlockSpec((hw, n), lambda b: (0, 0)),
                pl.BlockSpec((n, hw), lambda b: (0, 0)),
                pl.BlockSpec((cout, kk * cin), lambda b: (0, 0)),
                pl.BlockSpec((cin, kk * cout), lambda b: (0, 0)),
                pl.BlockSpec((cout, 1), lambda b: (0, 0)),
                pl.BlockSpec((1, n), lambda b: (0, 0)),
            ],
            out_specs=pl.BlockSpec((1, cin, hw), lambda b: (b, 0, 0)),
        ),
        compiler_params=pltpu.CompilerParams(
            dimension_semantics=("parallel",),
            vmem_limit_bytes=32 * 1024 * 1024),
        cost_estimate=pl.CostEstimate(flops=flops, transcendentals=0,
                                      bytes_accessed=bytes_accessed),
    )(x_rows, e, et, k1, k2, b2, mask)

    # free reshape back to NCHW (no transpose / slice over HBM)
    return out_rows.reshape(b_, cin, h, w).astype(x.dtype)


# ---------------------------------------------------------------------------
# Pure-JAX reference (mirrors the PyTorch forward)
# ---------------------------------------------------------------------------
def sdpconv_reference(x, kernel, bias, q):
    dn = ('NCHW', 'OIHW', 'NCHW')
    k = kernel.shape[-1]
    res = lax.conv_general_dilated(x, kernel, (1, 1), [(1, 1), (1, 1)],
                                   dimension_numbers=dn)
    res = jnp.maximum(res + bias[None, :, None, None], 0.0)
    kkt = lax.conv_general_dilated(kernel, kernel, (1, 1),
                                   [(k - 1, k - 1), (k - 1, k - 1)],
                                   dimension_numbers=dn)
    q_abs = jnp.abs(q)
    T = 2.0 / (jnp.abs(q_abs[None, :, None, None] * kkt).sum((1, 2, 3)) / q_abs)
    res = T[None, :, None, None] * res
    # conv_transpose2d(res, K, padding=1) == conv2d(res, flip+swap(K), padding=1)
    kT = jnp.transpose(kernel[:, :, ::-1, ::-1], (1, 0, 2, 3))
    res = lax.conv_general_dilated(res, kT, (1, 1), [(1, 1), (1, 1)],
                                   dimension_numbers=dn)
    return x - res


if __name__ == "__main__":
    # deterministic synthetic parameters / input (no checkpoint)
    B, cin, H, W = 2, 4, 16, 16
    cout, k = 8, 3

    key = jax.random.PRNGKey(0)
    k_k, k_b, k_q, k_x = jax.random.split(key, 4)

    # xavier_normal_ on (cout, cin, k, k)
    fan_in = cin * k * k
    fan_out = cout * k * k
    std = (2.0 / (fan_in + fan_out)) ** 0.5
    kernel = std * jax.random.normal(k_k, (cout, cin, k, k), jnp.float32)

    bound = 1.0 / (fan_in ** 0.5)
    bias = jax.random.uniform(k_b, (cout,), jnp.float32, -bound, bound)
    q = jax.random.normal(k_q, (cout,), jnp.float32)      # torch.randn(cout)

    x = jax.random.normal(k_x, (B, cin, H, W), jnp.float32)

    out = sdpconv_forward(x, kernel, bias, q)
    jax.block_until_ready(out)

    ref = sdpconv_reference(x, kernel, bias, q)
    err = float(jnp.max(jnp.abs(out - ref)))
    assert out.shape == (B, cin, H, W)
    assert jnp.allclose(out, ref, atol=1e-3, rtol=1e-3), (
        "mismatch vs reference, max abs err = %e" % err)

    print("KERNEL_OK")
</pallas_src>

<mosaic_0001>
module attributes {stable_mosaic.version = 11 : i64} {
  func.func @_sdpconv_kernel(%arg0: i32, %arg1: memref<1x4x256xf32, #tpu.memory_space<vmem>>, %arg2: memref<256x288xf32, #tpu.memory_space<vmem>>, %arg3: memref<288x256xf32, #tpu.memory_space<vmem>>, %arg4: memref<8x36xf32, #tpu.memory_space<vmem>>, %arg5: memref<4x72xf32, #tpu.memory_space<vmem>>, %arg6: memref<8x1xf32, #tpu.memory_space<vmem>>, %arg7: memref<1x288xf32, #tpu.memory_space<vmem>>, %arg8: memref<1x4x256xf32, #tpu.memory_space<vmem>>) attributes {dimension_semantics = [#tpu.dimension_semantics<parallel>], iteration_bounds = array<i64: 2>, scalar_prefetch = 0 : i64, scratch_operands = 0 : i64, tpu.core_type = #tpu.core_type<tc>, window_params = [{transform_indices = @transform_0, window_bounds = array<i64: 1, 4, 256>}, {pipeline_mode = #tpu.pipeline_mode<synchronous>, transform_indices = @transform_1, window_bounds = array<i64: 256, 288>}, {pipeline_mode = #tpu.pipeline_mode<synchronous>, transform_indices = @transform_2, window_bounds = array<i64: 288, 256>}, {pipeline_mode = #tpu.pipeline_mode<synchronous>, transform_indices = @transform_3, window_bounds = array<i64: 8, 36>}, {pipeline_mode = #tpu.pipeline_mode<synchronous>, transform_indices = @transform_4, window_bounds = array<i64: 4, 72>}, {pipeline_mode = #tpu.pipeline_mode<synchronous>, transform_indices = @transform_5, window_bounds = array<i64: 8, 1>}, {pipeline_mode = #tpu.pipeline_mode<synchronous>, transform_indices = @transform_6, window_bounds = array<i64: 1, 288>}, {transform_indices = @transform_7, window_bounds = array<i64: 1, 4, 256>}]} {
    %c0 = arith.constant 0 : index
    %c0_0 = arith.constant 0 : index
    %c0_1 = arith.constant 0 : index
    %0 = vector.load %arg1[%c0, %c0_0, %c0_1] : memref<1x4x256xf32, #tpu.memory_space<vmem>>, vector<1x4x256xf32>
    %1 = vector.shape_cast %0 : vector<1x4x256xf32> to vector<4x256xf32>
    %c0_2 = arith.constant 0 : index
    %c0_3 = arith.constant 0 : index
    %2 = vector.load %arg2[%c0_2, %c0_3] : memref<256x288xf32, #tpu.memory_space<vmem>>, vector<256x288xf32>
    %cst = arith.constant dense<0.000000e+00> : vector<4x288xf32>
    %3 = tpu.matmul %1, %2, %cst {dimension_numbers = #tpu.dot_dimension_numbers<[1], [0], [0], [1], [0, 0, 1, 1], [], []>} : vector<4x256xf32>, vector<256x288xf32>, vector<4x288xf32> -> vector<4x288xf32>
    %cst_4 = arith.constant 0.000000e+00 : f32
    %4 = vector.broadcast %cst_4 : f32 to vector<4x19xf32>
    %5 = tpu.concatenate %4, %3, %4 in 1 : vector<4x19xf32>, vector<4x288xf32>, vector<4x19xf32> -> vector<4x326xf32>
    %6 = vector.extract_strided_slice %5 {offsets = [0, 0], sizes = [4, 288], strides = [1, 1]} : vector<4x326xf32> to vector<4x288xf32>
    %7 = vector.extract_strided_slice %5 {offsets = [0, 1], sizes = [4, 288], strides = [1, 1]} : vector<4x326xf32> to vector<4x288xf32>
    %8 = vector.extract_strided_slice %5 {offsets = [0, 2], sizes = [4, 288], strides = [1, 1]} : vector<4x326xf32> to vector<4x288xf32>
    %9 = vector.extract_strided_slice %5 {offsets = [0, 18], sizes = [4, 288], strides = [1, 1]} : vector<4x326xf32> to vector<4x288xf32>
    %10 = vector.extract_strided_slice %5 {offsets = [0, 19], sizes = [4, 288], strides = [1, 1]} : vector<4x326xf32> to vector<4x288xf32>
    %11 = vector.extract_strided_slice %5 {offsets = [0, 20], sizes = [4, 288], strides = [1, 1]} : vector<4x326xf32> to vector<4x288xf32>
    %12 = vector.extract_strided_slice %5 {offsets = [0, 36], sizes = [4, 288], strides = [1, 1]} : vector<4x326xf32> to vector<4x288xf32>
    %13 = vector.extract_strided_slice %5 {offsets = [0, 37], sizes = [4, 288], strides = [1, 1]} : vector<4x326xf32> to vector<4x288xf32>
    %14 = vector.extract_strided_slice %5 {offsets = [0, 38], sizes = [4, 288], strides = [1, 1]} : vector<4x326xf32> to vector<4x288xf32>
    %15 = tpu.concatenate %6, %7, %8, %9, %10, %11, %12, %13, %14 in 0 : vector<4x288xf32>, vector<4x288xf32>, vector<4x288xf32>, vector<4x288xf32>, vector<4x288xf32>, vector<4x288xf32>, vector<4x288xf32>, vector<4x288xf32>, vector<4x288xf32> -> vector<36x288xf32>
    %c0_5 = arith.constant 0 : index
    %c0_6 = arith.constant 0 : index
    %16 = vector.load %arg4[%c0_5, %c0_6] : memref<8x36xf32, #tpu.memory_space<vmem>>, vector<8x36xf32>
    %cst_7 = arith.constant dense<0.000000e+00> : vector<8x288xf32>
    %17 = tpu.matmul %16, %15, %cst_7 {dimension_numbers = #tpu.dot_dimension_numbers<[1], [0], [0], [1], [0, 0, 1, 1], [], []>} : vector<8x36xf32>, vector<36x288xf32>, vector<8x288xf32> -> vector<8x288xf32>
    %c0_8 = arith.constant 0 : index
    %c0_9 = arith.constant 0 : index
    %18 = vector.load %arg6[%c0_8, %c0_9] : memref<8x1xf32, #tpu.memory_space<vmem>>, vector<8x1xf32>
    %19 = vector.broadcast %18 : vector<8x1xf32> to vector<8x288xf32>
    %20 = arith.addf %17, %19 : vector<8x288xf32>
    %cst_10 = arith.constant 0.000000e+00 : f32
    %21 = vector.broadcast %cst_10 : f32 to vector<8x288xf32>
    %22 = arith.maximumf %20, %21 : vector<8x288xf32>
    %c0_11 = arith.constant 0 : index
    %c0_12 = arith.constant 0 : index
    %23 = vector.load %arg7[%c0_11, %c0_12] : memref<1x288xf32, #tpu.memory_space<vmem>>, vector<1x288xf32>
    %24 = vector.broadcast %23 : vector<1x288xf32> to vector<8x288xf32>
    %25 = arith.mulf %22, %24 : vector<8x288xf32>
    %cst_13 = arith.constant 0.000000e+00 : f32
    %26 = vector.broadcast %cst_13 : f32 to vector<8x19xf32>
    %27 = tpu.concatenate %26, %25, %26 in 1 : vector<8x19xf32>, vector<8x288xf32>, vector<8x19xf32> -> vector<8x326xf32>
    %28 = vector.extract_strided_slice %27 {offsets = [0, 0], sizes = [8, 288], strides = [1, 1]} : vector<8x326xf32> to vector<8x288xf32>
    %29 = vector.extract_strided_slice %27 {offsets = [0, 1], sizes = [8, 288], strides = [1, 1]} : vector<8x326xf32> to vector<8x288xf32>
    %30 = vector.extract_strided_slice %27 {offsets = [0, 2], sizes = [8, 288], strides = [1, 1]} : vector<8x326xf32> to vector<8x288xf32>
    %31 = vector.extract_strided_slice %27 {offsets = [0, 18], sizes = [8, 288], strides = [1, 1]} : vector<8x326xf32> to vector<8x288xf32>
    %32 = vector.extract_strided_slice %27 {offsets = [0, 19], sizes = [8, 288], strides = [1, 1]} : vector<8x326xf32> to vector<8x288xf32>
    %33 = vector.extract_strided_slice %27 {offsets = [0, 20], sizes = [8, 288], strides = [1, 1]} : vector<8x326xf32> to vector<8x288xf32>
    %34 = vector.extract_strided_slice %27 {offsets = [0, 36], sizes = [8, 288], strides = [1, 1]} : vector<8x326xf32> to vector<8x288xf32>
    %35 = vector.extract_strided_slice %27 {offsets = [0, 37], sizes = [8, 288], strides = [1, 1]} : vector<8x326xf32> to vector<8x288xf32>
    %36 = vector.extract_strided_slice %27 {offsets = [0, 38], sizes = [8, 288], strides = [1, 1]} : vector<8x326xf32> to vector<8x288xf32>
    %37 = tpu.concatenate %28, %29, %30, %31, %32, %33, %34, %35, %36 in 0 : vector<8x288xf32>, vector<8x288xf32>, vector<8x288xf32>, vector<8x288xf32>, vector<8x288xf32>, vector<8x288xf32>, vector<8x288xf32>, vector<8x288xf32>, vector<8x288xf32> -> vector<72x288xf32>
    %c0_14 = arith.constant 0 : index
    %c0_15 = arith.constant 0 : index
    %38 = vector.load %arg5[%c0_14, %c0_15] : memref<4x72xf32, #tpu.memory_space<vmem>>, vector<4x72xf32>
    %cst_16 = arith.constant dense<0.000000e+00> : vector<4x288xf32>
    %39 = tpu.matmul %38, %37, %cst_16 {dimension_numbers = #tpu.dot_dimension_numbers<[1], [0], [0], [1], [0, 0, 1, 1], [], []>} : vector<4x72xf32>, vector<72x288xf32>, vector<4x288xf32> -> vector<4x288xf32>
    %40 = arith.subf %3, %39 : vector<4x288xf32>
    %c0_17 = arith.constant 0 : index
    %c0_18 = arith.constant 0 : index
    %41 = vector.load %arg3[%c0_17, %c0_18] : memref<288x256xf32, #tpu.memory_space<vmem>>, vector<288x256xf32>
    %cst_19 = arith.constant dense<0.000000e+00> : vector<4x256xf32>
    %42 = tpu.matmul %40, %41, %cst_19 {dimension_numbers = #tpu.dot_dimension_numbers<[1], [0], [0], [1], [0, 0, 1, 1], [], []>} : vector<4x288xf32>, vector<288x256xf32>, vector<4x256xf32> -> vector<4x256xf32>
    %c0_20 = arith.constant 0 : index
    %c0_21 = arith.constant 0 : index
    %c0_22 = arith.constant 0 : index
    %43 = vector.load %arg8[%c0_20, %c0_21, %c0_22] : memref<1x4x256xf32, #tpu.memory_space<vmem>>, vector<1x4x256xf32>
    %44 = vector.shape_cast %43 : vector<1x4x256xf32> to vector<4x256xf32>
    %45 = vector.shape_cast %42 : vector<4x256xf32> to vector<1x4x256xf32>
    tpu.vector_store %arg8[%c0_20, %c0_21, %c0_22], %45 {strides = array<i32>} : memref<1x4x256xf32, #tpu.memory_space<vmem>>, vector<1x4x256xf32>,
    return
  }
  func.func @transform_0(%arg0: i32) -> (i32, i32, i32) {
    %c0_i32 = arith.constant 0 : i32
    %c0_i32_0 = arith.constant 0 : i32
    %c0_i32_1 = arith.constant 0 : i32
    return %arg0, %c0_i32, %c0_i32_0 : i32, i32, i32
  }
  func.func @transform_1(%arg0: i32) -> (i32, i32) {
    %c0_i32 = arith.constant 0 : i32
    %c0_i32_0 = arith.constant 0 : i32
    %c0_i32_1 = arith.constant 0 : i32
    return %c0_i32, %c0_i32_0 : i32, i32
  }
  func.func @transform_2(%arg0: i32) -> (i32, i32) {
    %c0_i32 = arith.constant 0 : i32
    %c0_i32_0 = arith.constant 0 : i32
    %c0_i32_1 = arith.constant 0 : i32
    return %c0_i32, %c0_i32_0 : i32, i32
  }
  func.func @transform_3(%arg0: i32) -> (i32, i32) {
    %c0_i32 = arith.constant 0 : i32
    %c0_i32_0 = arith.constant 0 : i32
    %c0_i32_1 = arith.constant 0 : i32
    return %c0_i32, %c0_i32_0 : i32, i32
  }
  func.func @transform_4(%arg0: i32) -> (i32, i32) {
    %c0_i32 = arith.constant 0 : i32
    %c0_i32_0 = arith.constant 0 : i32
    %c0_i32_1 = arith.constant 0 : i32
    return %c0_i32, %c0_i32_0 : i32, i32
  }
  func.func @transform_5(%arg0: i32) -> (i32, i32) {
    %c0_i32 = arith.constant 0 : i32
    %c0_i32_0 = arith.constant 0 : i32
    %c0_i32_1 = arith.constant 0 : i32
    return %c0_i32, %c0_i32_0 : i32, i32
  }
  func.func @transform_6(%arg0: i32) -> (i32, i32) {
    %c0_i32 = arith.constant 0 : i32
    %c0_i32_0 = arith.constant 0 : i32
    %c0_i32_1 = arith.constant 0 : i32
    return %c0_i32, %c0_i32_0 : i32, i32
  }
  func.func @transform_7(%arg0: i32) -> (i32, i32, i32) {
    %c0_i32 = arith.constant 0 : i32
    %c0_i32_0 = arith.constant 0 : i32
    %c0_i32_1 = arith.constant 0 : i32
    return %arg0, %c0_i32, %c0_i32_0 : i32, i32, i32
  }
}

</mosaic_0001>

<llo_original>
// kernel: tpu_custom_call.1
$region0: #{tpu_custom_call.1}
  #allocation0 [shape = 'u32[]', space=smem, size = 0x4, offset = 0x4, fixed_abs, tag = 'smem constant byte address 0x4 - core index']
  #allocation1 [shape = 'u32[144,128]{1,0:T(1,128)}', space=vmem, size = 0x12000, scoped, tag = 'internal scratch']
  %s0 = inlined_call_operand.vmem [shape: f32[2,4,256], index: 0, kind: input, shape index: {}]
  %s1 = inlined_call_operand.vmem [shape: f32[256,288], index: 1, kind: input, shape index: {}]
  %s2 = inlined_call_operand.vmem [shape: f32[288,256], index: 2, kind: input, shape index: {}]
  %s3 = inlined_call_operand.vmem [shape: f32[8,36], index: 3, kind: input, shape index: {}]
  %s4 = inlined_call_operand.vmem [shape: f32[4,72], index: 4, kind: input, shape index: {}]
  %s5 = inlined_call_operand.vmem [shape: f32[8,1], index: 5, kind: input, shape index: {}]
  %s6 = inlined_call_operand.vmem [shape: f32[1,288], index: 6, kind: input, shape index: {}]
  %s7 = inlined_call_operand.hbm [shape: f32[2,4,256], index: 7, kind: output, shape index: {}]
  %s8 = sld [smem:[#allocation0]]
  $region61: #{tpu_custom_call.1} parent=0
    _
  %s10 = ssub.s32 1, %s8
  %s11 = scalar_select 0, %s10, %s8
  $region1: #{tpu_custom_call.1} parent=0
    #allocation2 [shape = 'u8[8192]{0}', space=vmem, size = 0x2000, scoped, tag = 'output window, operand 0']
    #allocation3 [shape = 's32[2]{0}', space=sflag, size = 0x8, scoped, tag = 'scoped memory for tpu_custom_call.1']
    %12 = vsyncpa [#allocation3], 0
    %s13 = scalar_lea.sflag [#allocation3], 1
    %14 = vsyncpa %s13, 0
    loop: start=0, step=1, limit=4
    $region2: #{tpu_custom_call.1} parent=1 // loop_pre_header
      _
    $region3: #{tpu_custom_call.1} parent=1 // loop_header
      %s16 = sphi 0, %s20
      %p17 = scmp.ge.s32.totalorder %s16, 4
      %s26 = sphi 0, %s28
      %s29 = sphi 0, %s26
      %s30 = sphi 0, %s29
      %s46 = sphi 0, %s30
      %s50 = sphi 0, %s50
      %s52 = sphi 0, %s50
      %s53 = sphi 0, %s52
      %s67 = sphi 0, %s53
      %s71 = sphi 0, %s71
      %s73 = sphi 0, %s71
      %s74 = sphi 0, %s73
      %s88 = sphi 0, %s74
      %s92 = sphi 0, %s92
      %s94 = sphi 0, %s92
      %s95 = sphi 0, %s94
      %s109 = sphi 0, %s95
      %s113 = sphi 0, %s113
      %s115 = sphi 0, %s113
      %s116 = sphi 0, %s115
      %s130 = sphi 0, %s116
      %s134 = sphi 0, %s134
      %s136 = sphi 0, %s134
      %s137 = sphi 0, %s136
      %s151 = sphi 0, %s137
      %s155 = sphi 0, %s155
      %s157 = sphi 0, %s155
      %s158 = sphi 0, %s157
      %s172 = sphi 0, %s158
      %s178 = sphi 0, %s180
      %s181 = sphi 0, %s178
      %s182 = sphi 0, %s181
      %s198 = sphi 0, %s182
    $region4: #{tpu_custom_call.1} parent=1 // loop_header_branch
      %19 = sbr.rel (%p17) target = $region8
    $region5: #{tpu_custom_call.1} parent=1 // loop_body
      %s21 = ssub.s32 %s16, 1
      %s22 = ssub.s32 %s16, 2
      %s23 = sadd.s32 %s16, 1
      %s24 = ssub.s32 %s16, %s23
      %p25 = scmp.eq.s32.totalorder %s24, 0
      %s27 = sadd.s32 %s26, 1
      %s28 = scalar_select %p25, %s26, %s27
      %p31 = pneg %p25
      %p32 = scmp.eq.s32.totalorder %s16, 1
      %p33 = por %p31, %p32
      %p34 = scmp.ne.s32.totalorder %s26, %s29
      %p35 = scmp.eq.s32.totalorder %s16, 0
      %p36 = por %p34, %p35
      %p37 = scmp.ne.s32.totalorder %s26, %s29
      %p38 = scmp.eq.s32.totalorder %s21, 1
      %p39 = por %p37, %p38
      %p40 = scmp.ne.s32.totalorder %s29, %s30
      %p41 = scmp.eq.s32.totalorder %s21, 0
      %p42 = por %p40, %p41
      %p43 = scmp.ne.s32.totalorder %s29, %s30
      %p44 = scmp.eq.s32.totalorder %s22, 1
      %p45 = por %p43, %p44
      %p47 = scmp.ne.s32.totalorder %s30, %s46
      %p48 = scmp.eq.s32.totalorder %s22, 0
      %p49 = por %p47, %p48
      %s51 = sadd.s32 %s50, 1
      %p54 = scmp.eq.s32.totalorder %s16, 1
      %p55 = scmp.ne.s32.totalorder %s50, %s52
      %p56 = scmp.eq.s32.totalorder %s16, 0
      %p57 = por %p55, %p56
      %p58 = scmp.ne.s32.totalorder %s50, %s52
      %p59 = scmp.eq.s32.totalorder %s21, 1
      %p60 = por %p58, %p59
      %p61 = scmp.ne.s32.totalorder %s52, %s53
      %p62 = scmp.eq.s32.totalorder %s21, 0
      %p63 = por %p61, %p62
      %p64 = scmp.ne.s32.totalorder %s52, %s53
      %p65 = scmp.eq.s32.totalorder %s22, 1
      %p66 = por %p64, %p65
      %p68 = scmp.ne.s32.totalorder %s53, %s67
      %p69 = scmp.eq.s32.totalorder %s22, 0
      %p70 = por %p68, %p69
      %s72 = sadd.s32 %s71, 1
      %p75 = scmp.eq.s32.totalorder %s16, 1
      %p76 = scmp.ne.s32.totalorder %s71, %s73
      %p77 = scmp.eq.s32.totalorder %s16, 0
      %p78 = por %p76, %p77
      %p79 = scmp.ne.s32.totalorder %s71, %s73
      %p80 = scmp.eq.s32.totalorder %s21, 1
      %p81 = por %p79, %p80
      %p82 = scmp.ne.s32.totalorder %s73, %s74
      %p83 = scmp.eq.s32.totalorder %s21, 0
      %p84 = por %p82, %p83
      %p85 = scmp.ne.s32.totalorder %s73, %s74
      %p86 = scmp.eq.s32.totalorder %s22, 1
      %p87 = por %p85, %p86
      %p89 = scmp.ne.s32.totalorder %s74, %s88
      %p90 = scmp.eq.s32.totalorder %s22, 0
      %p91 = por %p89, %p90
      %s93 = sadd.s32 %s92, 1
      %p96 = scmp.eq.s32.totalorder %s16, 1
      %p97 = scmp.ne.s32.totalorder %s92, %s94
      %p98 = scmp.eq.s32.totalorder %s16, 0
      %p99 = por %p97, %p98
      %p100 = scmp.ne.s32.totalorder %s92, %s94
      %p101 = scmp.eq.s32.totalorder %s21, 1
      %p102 = por %p100, %p101
      %p103 = scmp.ne.s32.totalorder %s94, %s95
      %p104 = scmp.eq.s32.totalorder %s21, 0
      %p105 = por %p103, %p104
      %p106 = scmp.ne.s32.totalorder %s94, %s95
      %p107 = scmp.eq.s32.totalorder %s22, 1
      %p108 = por %p106, %p107
      %p110 = scmp.ne.s32.totalorder %s95, %s109
      %p111 = scmp.eq.s32.totalorder %s22, 0
      %p112 = por %p110, %p111
      %s114 = sadd.s32 %s113, 1
      %p117 = scmp.eq.s32.totalorder %s16, 1
      %p118 = scmp.ne.s32.totalorder %s113, %s115
      %p119 = scmp.eq.s32.totalorder %s16, 0
      %p120 = por %p118, %p119
      %p121 = scmp.ne.s32.totalorder %s113, %s115
      %p122 = scmp.eq.s32.totalorder %s21, 1
      %p123 = por %p121, %p122
      %p124 = scmp.ne.s32.totalorder %s115, %s116
      %p125 = scmp.eq.s32.totalorder %s21, 0
      %p126 = por %p124, %p125
      %p127 = scmp.ne.s32.totalorder %s115, %s116
      %p128 = scmp.eq.s32.totalorder %s22, 1
      %p129 = por %p127, %p128
      %p131 = scmp.ne.s32.totalorder %s116, %s130
      %p132 = scmp.eq.s32.totalorder %s22, 0
      %p133 = por %p131, %p132
      %s135 = sadd.s32 %s134, 1
      %p138 = scmp.eq.s32.totalorder %s16, 1
      %p139 = scmp.ne.s32.totalorder %s134, %s136
      %p140 = scmp.eq.s32.totalorder %s16, 0
      %p141 = por %p139, %p140
      %p142 = scmp.ne.s32.totalorder %s134, %s136
      %p143 = scmp.eq.s32.totalorder %s21, 1
      %p144 = por %p142, %p143
      %p145 = scmp.ne.s32.totalorder %s136, %s137
      %p146 = scmp.eq.s32.totalorder %s21, 0
      %p147 = por %p145, %p146
      %p148 = scmp.ne.s32.totalorder %s136, %s137
      %p149 = scmp.eq.s32.totalorder %s22, 1
      %p150 = por %p148, %p149
      %p152 = scmp.ne.s32.totalorder %s137, %s151
      %p153 = scmp.eq.s32.totalorder %s22, 0
      %p154 = por %p152, %p153
      %s156 = sadd.s32 %s155, 1
      %p159 = scmp.eq.s32.totalorder %s16, 1
      %p160 = scmp.ne.s32.totalorder %s155, %s157
      %p161 = scmp.eq.s32.totalorder %s16, 0
      %p162 = por %p160, %p161
      %p163 = scmp.ne.s32.totalorder %s155, %s157
      %p164 = scmp.eq.s32.totalorder %s21, 1
      %p165 = por %p163, %p164
      %p166 = scmp.ne.s32.totalorder %s157, %s158
      %p167 = scmp.eq.s32.totalorder %s21, 0
      %p168 = por %p166, %p167
      %p169 = scmp.ne.s32.totalorder %s157, %s158
      %p170 = scmp.eq.s32.totalorder %s22, 1
      %p171 = por %p169, %p170
      %p173 = scmp.ne.s32.totalorder %s158, %s172
      %p174 = scmp.eq.s32.totalorder %s22, 0
      %p175 = por %p173, %p174
      %s176 = ssub.s32 %s16, %s23
      %p177 = scmp.eq.s32.totalorder %s176, 0
      %s179 = sadd.s32 %s178, 1
      %s180 = scalar_select %p177, %s178, %s179
      %p183 = pneg %p177
      %p184 = scmp.eq.s32.totalorder %s16, 1
      %p185 = por %p183, %p184
      %p186 = scmp.ne.s32.totalorder %s178, %s181
      %p187 = scmp.eq.s32.totalorder %s16, 0
      %p188 = por %p186, %p187
      %p189 = scmp.ne.s32.totalorder %s178, %s181
      %p190 = scmp.eq.s32.totalorder %s21, 1
      %p191 = por %p189, %p190
      %p192 = scmp.ne.s32.totalorder %s181, %s182
      %p193 = scmp.eq.s32.totalorder %s21, 0
      %p194 = por %p192, %p193
      %p195 = scmp.ne.s32.totalorder %s181, %s182
      %p196 = scmp.eq.s32.totalorder %s22, 1
      %p197 = por %p195, %p196
      %p199 = scmp.ne.s32.totalorder %s182, %s198
      %p200 = scmp.eq.s32.totalorder %s22, 0
      %p201 = por %p199, %p200
      %p202 = scmp.le.s32.totalorder 1, %s16
      %p203 = scmp.lt.s32.totalorder %s16, 3
      %p204 = pnand %p202, %p203
      %p205 = pneg %p204
      // Predicated region
      $region9: #{tpu_custom_call.1} parent=5 // pred_check
        _
      $region10: #{tpu_custom_call.1} parent=5 // pred_check_branch
        %207 = sbr.rel (%p204) target = $region12
      $region11: #{tpu_custom_call.1} parent=5 // pred_region
        %s208 = ssub.s32 %s16, 1
        // Predicated region
        $region13: #{tpu_custom_call.1} parent=11 // pred_check
          %p209 = pneg %p63
        $region14: #{tpu_custom_call.1} parent=11 // pred_check_branch
          %211 = sbr.rel (%p209) target = $region16
        $region15: #{tpu_custom_call.1} parent=11 // pred_region
          _
        $region16: #{tpu_custom_call.1} parent=11 // pred_fallthru
          _
        // Predicated region
        $region17: #{tpu_custom_call.1} parent=11 // pred_check
          %p212 = pneg %p84
        $region18: #{tpu_custom_call.1} parent=11 // pred_check_branch
          %214 = sbr.rel (%p212) target = $region20
        $region19: #{tpu_custom_call.1} parent=11 // pred_region
          _
        $region20: #{tpu_custom_call.1} parent=11 // pred_fallthru
          _
        // Predicated region
        $region21: #{tpu_custom_call.1} parent=11 // pred_check
          %p215 = pneg %p105
        $region22: #{tpu_custom_call.1} parent=11 // pred_check_branch
          %217 = sbr.rel (%p215) target = $region24
        $region23: #{tpu_custom_call.1} parent=11 // pred_region
          _
        $region24: #{tpu_custom_call.1} parent=11 // pred_fallthru
          _
        // Predicated region
        $region25: #{tpu_custom_call.1} parent=11 // pred_check
          %p218 = pneg %p126
        $region26: #{tpu_custom_call.1} parent=11 // pred_check_branch
          %220 = sbr.rel (%p218) target = $region28
        $region27: #{tpu_custom_call.1} parent=11 // pred_region
          _
        $region28: #{tpu_custom_call.1} parent=11 // pred_fallthru
          _
        // Predicated region
        $region29: #{tpu_custom_call.1} parent=11 // pred_check
          %p221 = pneg %p147
        $region30: #{tpu_custom_call.1} parent=11 // pred_check_branch
          %223 = sbr.rel (%p221) target = $region32
        $region31: #{tpu_custom_call.1} parent=11 // pred_region
          _
        $region32: #{tpu_custom_call.1} parent=11 // pred_fallthru
          _
        // Predicated region
        $region33: #{tpu_custom_call.1} parent=11 // pred_check
          %p224 = pneg %p168
        $region34: #{tpu_custom_call.1} parent=11 // pred_check_branch
          %226 = sbr.rel (%p224) target = $region36
        $region35: #{tpu_custom_call.1} parent=11 // pred_region
          _
        $region36: #{tpu_custom_call.1} parent=11 // pred_fallthru
          _
      $region12: #{tpu_custom_call.1} parent=5 // pred_fallthru
        _
      %p227 = scmp.lt.s32.totalorder %s16, 2
      // Predicated region
      $region37: #{tpu_custom_call.1} parent=5 // pred_check
        %p228 = pneg %p227
      $region38: #{tpu_custom_call.1} parent=5 // pred_check_branch
        %230 = sbr.rel (%p228) target = $region40
      $region39: #{tpu_custom_call.1} parent=5 // pred_region
        // Predicated region
        $region41: #{tpu_custom_call.1} parent=39 // pred_check
          %p231 = pneg %p36
        $region42: #{tpu_custom_call.1} parent=39 // pred_check_branch
          %233 = sbr.rel (%p231) target = $region44
        $region43: #{tpu_custom_call.1} parent=39 // pred_region
          %p234 = scmp.lt.s32.totalorder %s16, 1
          %s235 = scalar_select %p234, %s16, 1
          %s236 = smul.addr %s235, 2
          %s237 = smul.addr %s236, 4
          %s238 = scalar_lea.vmem %s0, %s237
        $region44: #{tpu_custom_call.1} parent=39 // pred_fallthru
          _
      $region40: #{tpu_custom_call.1} parent=5 // pred_fallthru
        _
      %p239 = scmp.le.s32.totalorder 1, %s16
      %p240 = scmp.lt.s32.totalorder %s16, 3
      %p241 = pnand %p239, %p240
      %p242 = pneg %p241
      // Predicated region
      $region45: #{tpu_custom_call.1} parent=5 // pred_check
        _
      $region46: #{tpu_custom_call.1} parent=5 // pred_check_branch
        %244 = sbr.rel (%p241) target = $region48
      $region47: #{tpu_custom_call.1} parent=5 // pred_region
        %s245 = ssub.s32 %s16, 1
        %p246 = scmp.lt.s32.totalorder %s21, 1
        %s247 = scalar_select %p246, %s21, 1
        %s248 = smul.addr %s247, 2
        %s249 = smul.addr %s248, 4
        %s250 = scalar_lea.vmem %s0, %s249
        %p251 = pneg %p42
        %p252 = pneg %p39
        %p253 = pneg %p63
        %p254 = pneg %p60
        %p255 = pneg %p84
        %p256 = pneg %p81
        %p257 = pneg %p105
        %p258 = pneg %p102
        %p259 = pneg %p126
        %p260 = pneg %p123
        %p261 = pneg %p147
        %p262 = pneg %p144
        %p263 = pneg %p168
        %p264 = pneg %p165
        %p265 = pneg %p194
        %p266 = pneg %p191
        %s267 = sand.u32 %s181, 1
        %s268 = scalar_lea.sflag [#allocation3], %s267
        %s269 = sand.u32 %s181, 1
        %s270 = smul.addr %s269, 8
        %s271 = scalar_lea.vmem [#allocation2], %s270
        %p272 = scmp.lt.s32.totalorder %s21, 1
        %s273 = scalar_select %p272, %s21, 1
        %s274 = smul.addr %s273, 2
        %s275 = smul.addr %s274, 4
        %s276 = scalar_lea.vmem %s0, %s275
        %v277 = vld [vmem:[%s276] sm:$0xff]
        %v278 = vld [vmem:[%s1] sm:$0xff]
        %v279 = vld [vmem:[%s1 + $0x8] sm:$0xff]
        %v280 = vld [vmem:[%s1 + $0x10] sm:$0xff]
        %v281 = vld [vmem:[%s1 + $0x18] sm:$0xff]
        %v282 = vld [vmem:[%s1 + $0x20] sm:$0xff]
        %v283 = vld [vmem:[%s1 + $0x28] sm:$0xff]
        %v284 = vld [vmem:[%s1 + $0x30] sm:$0xff]
        %v285 = vld [vmem:[%s1 + $0x38] sm:$0xff]
        %v286 = vld [vmem:[%s1 + $0x40] sm:$0xff]
        %v287 = vld [vmem:[%s1 + $0x48] sm:$0xff]
        %v288 = vld [vmem:[%s1 + $0x50] sm:$0xff]
        %v289 = vld [vmem:[%s1 + $0x58] sm:$0xff]
        %v290 = vld [vmem:[%s1 + $0x60] sm:$0xff]
        %v291 = vld [vmem:[%s1 + $0x68] sm:$0xff]
        %v292 = vld [vmem:[%s1 + $0x70] sm:$0xff]
        %v293 = vld [vmem:[%s1 + $0x78] sm:$0xff]
        %v294 = vld [vmem:[%s1 + $0x80] sm:$0xff]
        %v295 = vld [vmem:[%s1 + $0x88] sm:$0xff]
        %v296 = vld [vmem:[%s1 + $0x90] sm:$0xff]
        %v297 = vld [vmem:[%s1 + $0x98] sm:$0xff]
        %v298 = vld [vmem:[%s1 + $0xa0] sm:$0xff]
        %v299 = vld [vmem:[%s1 + $0xa8] sm:$0xff]
        %v300 = vld [vmem:[%s1 + $0xb0] sm:$0xff]
        %v301 = vld [vmem:[%s1 + $0xb8] sm:$0xff]
        %v302 = vld [vmem:[%s1 + $0xc0] sm:$0xff]
        %v303 = vld [vmem:[%s1 + $0xc8] sm:$0xff]
        %v304 = vld [vmem:[%s1 + $0xd0] sm:$0xff]
        %v305 = vld [vmem:[%s1 + $0xd8] sm:$0xff]
        %v306 = vld [vmem:[%s1 + $0xe0] sm:$0xff]
        %v307 = vld [vmem:[%s1 + $0xe8] sm:$0xff]
        %v308 = vld [vmem:[%s1 + $0xf0] sm:$0xff]
        %v309 = vld [vmem:[%s1 + $0xf8] sm:$0xff]
        %v310 = vld [vmem:[%s1 + $0x100] sm:$0xff]
        %v311 = vld [vmem:[%s1 + $0x108] sm:$0xff]
        %v312 = vld [vmem:[%s1 + $0x110] sm:$0xff]
        %v313 = vld [vmem:[%s1 + $0x118] sm:$0xff]
        %v314 = vld [vmem:[%s1 + $0x120] sm:$0xff]
        %v315 = vld [vmem:[%s1 + $0x128] sm:$0xff]
        %v316 = vld [vmem:[%s1 + $0x130] sm:$0xff]
        %v317 = vld [vmem:[%s1 + $0x138] sm:$0xff]
        %v318 = vld [vmem:[%s1 + $0x140] sm:$0xff]
        %v319 = vld [vmem:[%s1 + $0x148] sm:$0xff]
        %v320 = vld [vmem:[%s1 + $0x150] sm:$0xff]
        %v321 = vld [vmem:[%s1 + $0x158] sm:$0xff]
        %v322 = vld [vmem:[%s1 + $0x160] sm:$0xff]
        %v323 = vld [vmem:[%s1 + $0x168] sm:$0xff]
        %v324 = vld [vmem:[%s1 + $0x170] sm:$0xff]
        %v325 = vld [vmem:[%s1 + $0x178] sm:$0xff]
        %v326 = vld [vmem:[%s1 + $0x180] sm:$0xff]
        %v327 = vld [vmem:[%s1 + $0x188] sm:$0xff]
        %v328 = vld [vmem:[%s1 + $0x190] sm:$0xff]
        %v329 = vld [vmem:[%s1 + $0x198] sm:$0xff]
        %v330 = vld [vmem:[%s1 + $0x1a0] sm:$0xff]
        %v331 = vld [vmem:[%s1 + $0x1a8] sm:$0xff]
        %v332 = vld [vmem:[%s1 + $0x1b0] sm:$0xff]
        %v333 = vld [vmem:[%s1 + $0x1b8] sm:$0xff]
        %v334 = vld [vmem:[%s1 + $0x1c0] sm:$0xff]
        %v335 = vld [vmem:[%s1 + $0x1c8] sm:$0xff]
        %v336 = vld [vmem:[%s1 + $0x1d0] sm:$0xff]
        %v337 = vld [vmem:[%s1 + $0x1d8] sm:$0xff]
        %v338 = vld [vmem:[%s1 + $0x1e0] sm:$0xff]
        %v339 = vld [vmem:[%s1 + $0x1e8] sm:$0xff]
        %v340 = vld [vmem:[%s1 + $0x1f0] sm:$0xff]
        %v341 = vld [vmem:[%s1 + $0x1f8] sm:$0xff]
        %v342 = vld [vmem:[%s1 + $0x200] sm:$0xff]
        %v343 = vld [vmem:[%s1 + $0x208] sm:$0xff]
        %v344 = vld [vmem:[%s1 + $0x210] sm:$0xff]
        %v345 = vld [vmem:[%s1 + $0x218] sm:$0xff]
        %v346 = vld [vmem:[%s1 + $0x220] sm:$0xff]
        %v347 = vld [vmem:[%s1 + $0x228] sm:$0xff]
        %v348 = vld [vmem:[%s1 + $0x230] sm:$0xff]
        %v349 = vld [vmem:[%s1 + $0x238] sm:$0xff]
        %v350 = vld [vmem:[%s1 + $0x240] sm:$0xff]
        %v351 = vld [vmem:[%s1 + $0x248] sm:$0xff]
        %v352 = vld [vmem:[%s1 + $0x250] sm:$0xff]
        %v353 = vld [vmem:[%s1 + $0x258] sm:$0xff]
        %v354 = vld [vmem:[%s1 + $0x260] sm:$0xff]
        %v355 = vld [vmem:[%s1 + $0x268] sm:$0xff]
        %v356 = vld [vmem:[%s1 + $0x270] sm:$0xff]
        %v357 = vld [vmem:[%s1 + $0x278] sm:$0xff]
        %v358 = vld [vmem:[%s1 + $0x280] sm:$0xff]
        %v359 = vld [vmem:[%s1 + $0x288] sm:$0xff]
        %v360 = vld [vmem:[%s1 + $0x290] sm:$0xff]
        %v361 = vld [vmem:[%s1 + $0x298] sm:$0xff]
        %v362 = vld [vmem:[%s1 + $0x2a0] sm:$0xff]
        %v363 = vld [vmem:[%s1 + $0x2a8] sm:$0xff]
        %v364 = vld [vmem:[%s1 + $0x2b0] sm:$0xff]
        %v365 = vld [vmem:[%s1 + $0x2b8] sm:$0xff]
        %v366 = vld [vmem:[%s1 + $0x2c0] sm:$0xff]
        %v367 = vld [vmem:[%s1 + $0x2c8] sm:$0xff]
        %v368 = vld [vmem:[%s1 + $0x2d0] sm:$0xff]
        %v369 = vld [vmem:[%s1 + $0x2d8] sm:$0xff]
        %v370 = vld [vmem:[%s1 + $0x2e0] sm:$0xff]
        %v371 = vld [vmem:[%s1 + $0x2e8] sm:$0xff]
        %v372 = vld [vmem:[%s1 + $0x2f0] sm:$0xff]
        %v373 = vld [vmem:[%s1 + $0x2f8] sm:$0xff]
        %v375 = vcombine.high %v277, %v277
        %377 = vmatprep.subr.mxu0 %v279
        %378 = vmatpush1.msra.mxu0 %v278
        %379 = vmatprep.subr.mxu0 %v282
        %380 = vmatpush1.msra.mxu0 %v281
        %381 = vmatprep.subr.mxu0 %v285
        %382 = vmatpush1.msra.mxu0 %v284
        %383 = vmatprep.subr.mxu0 %v288
        %384 = vmatpush1.msra.mxu0 %v287
        %385 = vmatprep.subr.mxu0 %v291
        %386 = vmatpush1.msra.mxu0 %v290
        %387 = vmatprep.subr.mxu0 %v294
        %388 = vmatpush1.msra.mxu0 %v293
        %389 = vmatprep.subr.mxu0 %v297
        %390 = vmatpush1.msra.mxu0 %v296
        %391 = vmatprep.subr.mxu0 %v300
        %392 = vmatpush1.msra.mxu0 %v299
        %393 = vmatprep.subr.mxu0 %v303
        %394 = vmatpush1.msra.mxu0 %v302
        %395 = vmatprep.subr.mxu0 %v306
        %396 = vmatpush1.msra.mxu0 %v305
        %397 = vmatprep.subr.mxu0 %v309
        %398 = vmatpush1.msra.mxu0 %v308
        %399 = vmatprep.subr.mxu0 %v312
        %400 = vmatpush1.msra.mxu0 %v311
        %401 = vmatprep.subr.mxu0 %v315
        %402 = vmatpush1.msra.mxu0 %v314
        %403 = vmatprep.subr.mxu0 %v318
        %404 = vmatpush1.msra.mxu0 %v317
        %405 = vmatprep.subr.mxu0 %v321
        %406 = vmatpush1.msra.mxu0 %v320
        %407 = vmatprep.subr.mxu0 %v324
        %408 = vmatpush1.msra.mxu0 %v323
        %409 = vmatprep.subr.mxu0 %v327
        %410 = vmatpush1.msra.mxu0 %v326
        %411 = vmatprep.subr.mxu0 %v330
        %412 = vmatpush1.msra.mxu0 %v329
        %413 = vmatprep.subr.mxu0 %v333
        %414 = vmatpush1.msra.mxu0 %v332
        %415 = vmatprep.subr.mxu0 %v336
        %416 = vmatpush1.msra.mxu0 %v335
        %417 = vmatprep.subr.mxu0 %v339
        %418 = vmatpush1.msra.mxu0 %v338
        %419 = vmatprep.subr.mxu0 %v342
        %420 = vmatpush1.msra.mxu0 %v341
        %421 = vmatprep.subr.mxu0 %v345
        %422 = vmatpush1.msra.mxu0 %v344
        %423 = vmatprep.subr.mxu0 %v348
        %424 = vmatpush1.msra.mxu0 %v347
        %425 = vmatprep.subr.mxu0 %v351
        %426 = vmatpush1.msra.mxu0 %v350
        %427 = vmatprep.subr.mxu0 %v354
        %428 = vmatpush1.msra.mxu0 %v353
        %429 = vmatprep.subr.mxu0 %v357
        %430 = vmatpush1.msra.mxu0 %v356
        %431 = vmatprep.subr.mxu0 %v360
        %432 = vmatpush1.msra.mxu0 %v359
        %433 = vmatprep.subr.mxu0 %v363
        %434 = vmatpush1.msra.mxu0 %v362
        %435 = vmatprep.subr.mxu0 %v366
        %436 = vmatpush1.msra.mxu0 %v365
        %437 = vmatprep.subr.mxu0 %v369
        %438 = vmatpush1.msra.mxu0 %v368
        %439 = vmatprep.subr.mxu0 %v372
        %440 = vmatpush1.msra.mxu0 %v371
        %441 = vmatprep.mubr.f32.mxu0 %v375
        %442 = vmatmul.mubr.f32.gmra.mrb[0].mxu0 %v277
        %v443 = vpop.f32.mrb[0].mxu0
        %v444 = vadd.f32 0.0, %v443
        %v445 = vpop.f32.mrb[0].mxu0
        %v446 = vadd.f32 0.0, %v445
        %447 = vdwg.mxu0
        %448 = vmatprep.subr.mxu0 0.0
        %449 = vmatpush1.msra.mxu0 %v280
        %450 = vmatprep.subr.mxu0 0.0
        %451 = vmatpush1.msra.mxu0 %v283
        %452 = vmatprep.subr.mxu0 0.0
        %453 = vmatpush1.msra.mxu0 %v286
        %454 = vmatprep.subr.mxu0 0.0
        %455 = vmatpush1.msra.mxu0 %v289
        %456 = vmatprep.subr.mxu0 0.0
        %457 = vmatpush1.msra.mxu0 %v292
        %458 = vmatprep.subr.mxu0 0.0
        %459 = vmatpush1.msra.mxu0 %v295
        %460 = vmatprep.subr.mxu0 0.0
        %461 = vmatpush1.msra.mxu0 %v298
        %462 = vmatprep.subr.mxu0 0.0
        %463 = vmatpush1.msra.mxu0 %v301
        %464 = vmatprep.subr.mxu0 0.0
        %465 = vmatpush1.msra.mxu0 %v304
        %466 = vmatprep.subr.mxu0 0.0
        %467 = vmatpush1.msra.mxu0 %v307
        %468 = vmatprep.subr.mxu0 0.0
        %469 = vmatpush1.msra.mxu0 %v310
        %470 = vmatprep.subr.mxu0 0.0
        %471 = vmatpush1.msra.mxu0 %v313
        %472 = vmatprep.subr.mxu0 0.0
        %473 = vmatpush1.msra.mxu0 %v316
        %474 = vmatprep.subr.mxu0 0.0
        %475 = vmatpush1.msra.mxu0 %v319
        %476 = vmatprep.subr.mxu0 0.0
        %477 = vmatpush1.msra.mxu0 %v322
        %478 = vmatprep.subr.mxu0 0.0
        %479 = vmatpush1.msra.mxu0 %v325
        %480 = vmatprep.subr.mxu0 0.0
        %481 = vmatpush1.msra.mxu0 %v328
        %482 = vmatprep.subr.mxu0 0.0
        %483 = vmatpush1.msra.mxu0 %v331
        %484 = vmatprep.subr.mxu0 0.0
        %485 = vmatpush1.msra.mxu0 %v334
        %486 = vmatprep.subr.mxu0 0.0
        %487 = vmatpush1.msra.mxu0 %v337
        %488 = vmatprep.subr.mxu0 0.0
        %489 = vmatpush1.msra.mxu0 %v340
        %490 = vmatprep.subr.mxu0 0.0
        %491 = vmatpush1.msra.mxu0 %v343
        %492 = vmatprep.subr.mxu0 0.0
        %493 = vmatpush1.msra.mxu0 %v346
        %494 = vmatprep.subr.mxu0 0.0
        %495 = vmatpush1.msra.mxu0 %v349
        %496 = vmatprep.subr.mxu0 0.0
        %497 = vmatpush1.msra.mxu0 %v352
        %498 = vmatprep.subr.mxu0 0.0
        %499 = vmatpush1.msra.mxu0 %v355
        %500 = vmatprep.subr.mxu0 0.0
        %501 = vmatpush1.msra.mxu0 %v358
        %502 = vmatprep.subr.mxu0 0.0
        %503 = vmatpush1.msra.mxu0 %v361
        %504 = vmatprep.subr.mxu0 0.0
        %505 = vmatpush1.msra.mxu0 %v364
        %506 = vmatprep.subr.mxu0 0.0
        %507 = vmatpush1.msra.mxu0 %v367
        %508 = vmatprep.subr.mxu0 0.0
        %509 = vmatpush1.msra.mxu0 %v370
        %510 = vmatprep.subr.mxu0 0.0
        %511 = vmatpush1.msra.mxu0 %v373
        %512 = vmatprep.mubr.f32.mxu0 %v375
        %513 = vmatmul.mubr.f32.gmra.mrb[0].mxu0 %v277
        %v514 = vpop.f32.mrb[0].mxu0
        %v515 = vadd.f32 0.0, %v514
        %v516 = vpop.f32.mrb[0].mxu0
        %517 = vdwg.mxu0
        %521 = vrot.lane.b32.xlu0 %v444, 19
        %v522 = vpop.permute.xlu0 %521
        %523 = vrot.lane.b32.xlu0 %v446, 19
        %v524 = vpop.permute.xlu0 %523
        %525 = vrot.lane.b32.xlu0 %v515, 19
        %v526 = vpop.permute.xlu0 %525
        %vm527 = vcmask 154624
        %v528 = vsel %vm527, %v522, %v524
        %v529 = vsel %vm527, %v524, %v526
        %v533 = vsel %vm527, 0.0, %v522
        %vm534 = vcmask 416768
        %v535 = vsel %vm534, %v529, 0.0
        %v538 = vrot.slane %v533, 4
        %v539 = vrot.slane %v528, 4
        %v540 = vrot.slane %v535, 4
        %541 = vrot.lane.b32.xlu0 %v538, 127
        %v542 = vpop.permute.xlu0 %541
        %543 = vrot.lane.b32.xlu0 %v539, 127
        %v544 = vpop.permute.xlu0 %543
        %545 = vrot.lane.b32.xlu0 %v540, 127
        %v546 = vpop.permute.xlu0 %545
        %vm547 = vcmask 1039360
        %v548 = vsel %vm547, %v542, %v544
        %v549 = vsel %vm547, %v544, %v546
        %553 = vrot.lane.b32.xlu0 %v533, 126
        %v554 = vpop.permute.xlu0 %553
        %555 = vrot.lane.b32.xlu0 %v528, 126
        %v556 = vpop.permute.xlu0 %555
        %557 = vrot.lane.b32.xlu0 %v535, 126
        %v558 = vpop.permute.xlu0 %557
        %vm559 = vcmask 1031168
        %v560 = vsel %vm559, %v554, %v556
        %v561 = vsel %vm559, %v556, %v558
        %565 = vrot.lane.b32.xlu0 %v538, 110
        %v566 = vpop.permute.xlu0 %565
        %567 = vrot.lane.b32.xlu0 %v539, 110
        %v568 = vpop.permute.xlu0 %567
        %569 = vrot.lane.b32.xlu0 %v540, 110
        %v570 = vpop.permute.xlu0 %569
        %vm571 = vcmask 900096
        %v572 = vsel %vm571, %v566, %v568
        %v573 = vsel %vm571, %v568, %v570
        %577 = vrot.lane.b32.xlu0 %v533, 109
        %v578 = vpop.permute.xlu0 %577
        %579 = vrot.lane.b32.xlu0 %v528, 109
        %v580 = vpop.permute.xlu0 %579
        %581 = vrot.lane.b32.xlu0 %v535, 109
        %v582 = vpop.permute.xlu0 %581
        %vm583 = vcmask 891904
        %v584 = vsel %vm583, %v578, %v580
        %v585 = vsel %vm583, %v580, %v582
        %589 = vrot.lane.b32.xlu0 %v538, 108
        %v590 = vpop.permute.xlu0 %589
        %591 = vrot.lane.b32.xlu0 %v539, 108
        %v592 = vpop.permute.xlu0 %591
        %593 = vrot.lane.b32.xlu0 %v540, 108
        %v594 = vpop.permute.xlu0 %593
        %vm595 = vcmask 883712
        %v596 = vsel %vm595, %v590, %v592
        %v597 = vsel %vm595, %v592, %v594
        %601 = vrot.lane.b32.xlu0 %v533, 92
        %v602 = vpop.permute.xlu0 %601
        %603 = vrot.lane.b32.xlu0 %v528, 92
        %v604 = vpop.permute.xlu0 %603
        %605 = vrot.lane.b32.xlu0 %v535, 92
        %v606 = vpop.permute.xlu0 %605
        %vm607 = vcmask 752640
        %v608 = vsel %vm607, %v602, %v604
        %v609 = vsel %vm607, %v604, %v606
        %613 = vrot.lane.b32.xlu0 %v538, 91
        %v614 = vpop.permute.xlu0 %613
        %615 = vrot.lane.b32.xlu0 %v539, 91
        %v616 = vpop.permute.xlu0 %615
        %617 = vrot.lane.b32.xlu0 %v540, 91
        %v618 = vpop.permute.xlu0 %617
        %vm619 = vcmask 744448
        %v620 = vsel %vm619, %v614, %v616
        %v621 = vsel %vm619, %v616, %v618
        %625 = vrot.lane.b32.xlu0 %v533, 90
        %v626 = vpop.permute.xlu0 %625
        %627 = vrot.lane.b32.xlu0 %v528, 90
        %v628 = vpop.permute.xlu0 %627
        %629 = vrot.lane.b32.xlu0 %v535, 90
        %v630 = vpop.permute.xlu0 %629
        %vm631 = vcmask 736256
        %v632 = vsel %vm631, %v626, %v628
        %v633 = vsel %vm631, %v628, %v630
        %vm634 = vcmask 1043456
        %v635 = vsel %vm634, %v533, %v548
        %v636 = vsel %vm634, %v528, %v549
        %v637 = vsel %vm634, %v535, %v546
        %v638 = vsel %vm634, %v560, %v572
        %v639 = vsel %vm634, %v561, %v573
        %v640 = vsel %vm634, %v558, %v570
        %v641 = vsel %vm634, %v584, %v596
        %v642 = vsel %vm634, %v585, %v597
        %v643 = vsel %vm634, %v582, %v594
        %v644 = vsel %vm634, %v608, %v620
        %v645 = vsel %vm634, %v609, %v621
        %v646 = vsel %vm634, %v606, %v618
        %v647 = vld [vmem:[%s3] sm:$0xff]
        %v648 = vld [vmem:[%s5] sm:$0xff]
        %650 = vset.pattern.permute.xlu0 0
        %651 = vperm.xlu0 %650, %v648
        %v652 = vpop.permute.xlu0 %651
        %vm654 = vcmask 293888
        %v656 = vsel %vm654, %v647, 0
        %v658 = vsel %vm634, %v632, 0
        %v660 = vsel %vm634, %v633, 0
        %v662 = vsel %vm634, %v630, 0
        %664 = vmatprep.subr.mxu0 %v636
        %665 = vmatpush1.msra.mxu0 %v635
        %666 = vmatprep.subr.mxu0 %v639
        %667 = vmatpush1.msra.mxu0 %v638
        %668 = vmatprep.subr.mxu0 %v642
        %669 = vmatpush1.msra.mxu0 %v641
        %670 = vmatprep.subr.mxu0 %v645
        %671 = vmatpush1.msra.mxu0 %v644
        %672 = vmatprep.subr.mxu0 %v660
        %673 = vmatpush1.msra.mxu0 %v658
        %674 = vmatprep.subr.mxu0 0.0
        %675 = vmatpush1.msra.mxu0 0.0
        %676 = vmatprep.subr.mxu0 0.0
        %677 = vmatpush1.msra.mxu0 0.0
        %678 = vmatprep.subr.mxu0 0.0
        %679 = vmatpush1.msra.mxu0 0.0
        %680 = vmatprep.subr.mxu0 0.0
        %681 = vmatpush1.msra.mxu0 0.0
        %682 = vmatprep.subr.mxu0 0.0
        %683 = vmatpush1.msra.mxu0 0.0
        %684 = vmatprep.subr.mxu0 0.0
        %685 = vmatpush1.msra.mxu0 0.0
        %686 = vmatprep.subr.mxu0 0.0
        %687 = vmatpush1.msra.mxu0 0.0
        %688 = vmatprep.subr.mxu0 0.0
        %689 = vmatpush1.msra.mxu0 0.0
        %690 = vmatprep.subr.mxu0 0.0
        %691 = vmatpush1.msra.mxu0 0.0
        %692 = vmatprep.subr.mxu0 0.0
        %693 = vmatpush1.msra.mxu0 0.0
        %694 = vmatprep.subr.mxu0 0.0
        %695 = vmatpush1.msra.mxu0 0.0
        %696 = vmatprep.subr.mxu0 0.0
        %697 = vmatpush1.msra.mxu0 0.0
        %698 = vmatprep.subr.mxu0 0.0
        %699 = vmatpush1.msra.mxu0 0.0
        %700 = vmatprep.subr.mxu0 0.0
        %701 = vmatpush1.msra.mxu0 0.0
        %702 = vmatprep.subr.mxu0 0.0
        %703 = vmatpush1.msra.mxu0 0.0
        %704 = vmatprep.subr.mxu0 0.0
        %705 = vmatpush1.msra.mxu0 0.0
        %706 = vmatprep.subr.mxu0 0.0
        %707 = vmatpush1.msra.mxu0 0.0
        %708 = vmatprep.subr.mxu0 0.0
        %709 = vmatpush1.msra.mxu0 0.0
        %710 = vmatprep.subr.mxu0 0.0
        %711 = vmatpush1.msra.mxu0 0.0
        %712 = vmatprep.subr.mxu0 0.0
        %713 = vmatpush1.msra.mxu0 0.0
        %714 = vmatprep.subr.mxu0 0.0
        %715 = vmatpush1.msra.mxu0 0.0
        %716 = vmatprep.subr.mxu0 0.0
        %717 = vmatpush1.msra.mxu0 0.0
        %718 = vmatprep.subr.mxu0 0.0
        %719 = vmatpush1.msra.mxu0 0.0
        %720 = vmatprep.subr.mxu0 0.0
        %721 = vmatpush1.msra.mxu0 0.0
        %722 = vmatprep.subr.mxu0 0.0
        %723 = vmatpush1.msra.mxu0 0.0
        %724 = vmatprep.subr.mxu0 0.0
        %725 = vmatpush1.msra.mxu0 0.0
        %726 = vmatprep.subr.mxu0 0.0
        %727 = vmatpush1.msra.mxu0 0.0
        %728 = vmatprep.mubr.f32.mxu0 0.0
        %729 = vmatmul.mubr.f32.gmra.mrb[0].mxu0 %v656
        %v730 = vpop.f32.mrb[0].mxu0
        %v731 = vadd.f32 %v652, %v730
        %v732 = vpop.f32.mrb[0].mxu0
        %v733 = vadd.f32 %v652, %v732
        %734 = vdwg.mxu0
        %735 = vmatprep.subr.mxu0 0.0
        %736 = vmatpush1.msra.mxu0 %v637
        %737 = vmatprep.subr.mxu0 0.0
        %738 = vmatpush1.msra.mxu0 %v640
        %739 = vmatprep.subr.mxu0 0.0
        %740 = vmatpush1.msra.mxu0 %v643
        %741 = vmatprep.subr.mxu0 0.0
        %742 = vmatpush1.msra.mxu0 %v646
        %743 = vmatprep.subr.mxu0 0.0
        %744 = vmatpush1.msra.mxu0 %v662
        %745 = vmatprep.subr.mxu0 0.0
        %746 = vmatpush1.msra.mxu0 0.0
        %747 = vmatprep.subr.mxu0 0.0
        %748 = vmatpush1.msra.mxu0 0.0
        %749 = vmatprep.subr.mxu0 0.0
        %750 = vmatpush1.msra.mxu0 0.0
        %751 = vmatprep.subr.mxu0 0.0
        %752 = vmatpush1.msra.mxu0 0.0
        %753 = vmatprep.subr.mxu0 0.0
        %754 = vmatpush1.msra.mxu0 0.0
        %755 = vmatprep.subr.mxu0 0.0
        %756 = vmatpush1.msra.mxu0 0.0
        %757 = vmatprep.subr.mxu0 0.0
        %758 = vmatpush1.msra.mxu0 0.0
        %759 = vmatprep.subr.mxu0 0.0
        %760 = vmatpush1.msra.mxu0 0.0
        %761 = vmatprep.subr.mxu0 0.0
        %762 = vmatpush1.msra.mxu0 0.0
        %763 = vmatprep.subr.mxu0 0.0
        %764 = vmatpush1.msra.mxu0 0.0
        %765 = vmatprep.subr.mxu0 0.0
        %766 = vmatpush1.msra.mxu0 0.0
        %767 = vmatprep.subr.mxu0 0.0
        %768 = vmatpush1.msra.mxu0 0.0
        %769 = vmatprep.subr.mxu0 0.0
        %770 = vmatpush1.msra.mxu0 0.0
        %771 = vmatprep.subr.mxu0 0.0
        %772 = vmatpush1.msra.mxu0 0.0
        %773 = vmatprep.subr.mxu0 0.0
        %774 = vmatpush1.msra.mxu0 0.0
        %775 = vmatprep.subr.mxu0 0.0
        %776 = vmatpush1.msra.mxu0 0.0
        %777 = vmatprep.subr.mxu0 0.0
        %778 = vmatpush1.msra.mxu0 0.0
        %779 = vmatprep.subr.mxu0 0.0
        %780 = vmatpush1.msra.mxu0 0.0
        %781 = vmatprep.subr.mxu0 0.0
        %782 = vmatpush1.msra.mxu0 0.0
        %783 = vmatprep.subr.mxu0 0.0
        %784 = vmatpush1.msra.mxu0 0.0
        %785 = vmatprep.subr.mxu0 0.0
        %786 = vmatpush1.msra.mxu0 0.0
        %787 = vmatprep.subr.mxu0 0.0
        %788 = vmatpush1.msra.mxu0 0.0
        %789 = vmatprep.subr.mxu0 0.0
        %790 = vmatpush1.msra.mxu0 0.0
        %791 = vmatprep.subr.mxu0 0.0
        %792 = vmatpush1.msra.mxu0 0.0
        %793 = vmatprep.subr.mxu0 0.0
        %794 = vmatpush1.msra.mxu0 0.0
        %795 = vmatprep.subr.mxu0 0.0
        %796 = vmatpush1.msra.mxu0 0.0
        %797 = vmatprep.subr.mxu0 0.0
        %798 = vmatpush1.msra.mxu0 0.0
        %799 = vmatprep.mubr.f32.mxu0 0.0
        %800 = vmatmul.mubr.f32.gmra.mrb[0].mxu0 %v656
        %v801 = vpop.f32.mrb[0].mxu0
        %v802 = vadd.f32 %v652, %v801
        %v803 = vpop.f32.mrb[0].mxu0
        %804 = vdwg.mxu0
        %v805 = vmax.f32 %v731, 0.0
        %v806 = vmax.f32 %v733, 0.0
        %v807 = vmax.f32 %v802, 0.0
        %v808 = vld [vmem:[%s6] sm:$0x7]
        %v810 = vlaneseq
        %v811 = vshrl.u32 %v810, 7
        %v812 = vsub.s32 0, %v811
        %v813 = vrot.slane %v808, %v812
        %v814 = vlaneseq
        %v815 = vshrl.u32 %v814, 7
        %v816 = vsub.s32 1, %v815
        %v817 = vrot.slane %v808, %v816
        %v818 = vlaneseq
        %v819 = vshrl.u32 %v818, 7
        %v820 = vsub.s32 2, %v819
        %v821 = vrot.slane %v808, %v820
        %v825 = vmul.f32 %v805, %v813
        %v826 = vmul.f32 %v806, %v817
        %v827 = vmul.f32 %v807, %v821
        %831 = vrot.lane.b32.xlu0 %v825, 19
        %v832 = vpop.permute.xlu0 %831
        %833 = vrot.lane.b32.xlu0 %v826, 19
        %v834 = vpop.permute.xlu0 %833
        %835 = vrot.lane.b32.xlu0 %v827, 19
        %v836 = vpop.permute.xlu0 %835
        %v837 = vsel %vm527, %v832, %v834
        %v838 = vsel %vm527, %v834, %v836
        %v842 = vsel %vm527, 0.0, %v832
        %v843 = vsel %vm534, %v838, 0.0
        %846 = vrot.lane.b32.xlu0 %v842, 127
        %v847 = vpop.permute.xlu0 %846
        %848 = vrot.lane.b32.xlu0 %v837, 127
        %v849 = vpop.permute.xlu0 %848
        %850 = vrot.lane.b32.xlu0 %v843, 127
        %v851 = vpop.permute.xlu0 %850
        %v852 = vsel %vm547, %v847, %v849
        %v853 = vsel %vm547, %v849, %v851
        %857 = vrot.lane.b32.xlu0 %v842, 126
        %v858 = vpop.permute.xlu0 %857
        %859 = vrot.lane.b32.xlu0 %v837, 126
        %v860 = vpop.permute.xlu0 %859
        %861 = vrot.lane.b32.xlu0 %v843, 126
        %v862 = vpop.permute.xlu0 %861
        %v863 = vsel %vm559, %v858, %v860
        %v864 = vsel %vm559, %v860, %v862
        %868 = vrot.lane.b32.xlu0 %v842, 110
        %v869 = vpop.permute.xlu0 %868
        %870 = vrot.lane.b32.xlu0 %v837, 110
        %v871 = vpop.permute.xlu0 %870
        %872 = vrot.lane.b32.xlu0 %v843, 110
        %v873 = vpop.permute.xlu0 %872
        %v874 = vsel %vm571, %v869, %v871
        %v875 = vsel %vm571, %v871, %v873
        %879 = vrot.lane.b32.xlu0 %v842, 109
        %v880 = vpop.permute.xlu0 %879
        %881 = vrot.lane.b32.xlu0 %v837, 109
        %v882 = vpop.permute.xlu0 %881
        %883 = vrot.lane.b32.xlu0 %v843, 109
        %v884 = vpop.permute.xlu0 %883
        %v885 = vsel %vm583, %v880, %v882
        %v886 = vsel %vm583, %v882, %v884
        %890 = vrot.lane.b32.xlu0 %v842, 108
        %v891 = vpop.permute.xlu0 %890
        %892 = vrot.lane.b32.xlu0 %v837, 108
        %v893 = vpop.permute.xlu0 %892
        %894 = vrot.lane.b32.xlu0 %v843, 108
        %v895 = vpop.permute.xlu0 %894
        %v896 = vsel %vm595, %v891, %v893
        %v897 = vsel %vm595, %v893, %v895
        %901 = vrot.lane.b32.xlu0 %v842, 92
        %v902 = vpop.permute.xlu0 %901
        %903 = vrot.lane.b32.xlu0 %v837, 92
        %v904 = vpop.permute.xlu0 %903
        %905 = vrot.lane.b32.xlu0 %v843, 92
        %v906 = vpop.permute.xlu0 %905
        %v907 = vsel %vm607, %v902, %v904
        %v908 = vsel %vm607, %v904, %v906
        %912 = vrot.lane.b32.xlu0 %v842, 91
        %v913 = vpop.permute.xlu0 %912
        %914 = vrot.lane.b32.xlu0 %v837, 91
        %v915 = vpop.permute.xlu0 %914
        %916 = vrot.lane.b32.xlu0 %v843, 91
        %v917 = vpop.permute.xlu0 %916
        %v918 = vsel %vm619, %v913, %v915
        %v919 = vsel %vm619, %v915, %v917
        %923 = vrot.lane.b32.xlu0 %v842, 90
        %v924 = vpop.permute.xlu0 %923
        %925 = vrot.lane.b32.xlu0 %v837, 90
        %v926 = vpop.permute.xlu0 %925
        %927 = vrot.lane.b32.xlu0 %v843, 90
        %v928 = vpop.permute.xlu0 %927
        %v929 = vsel %vm631, %v924, %v926
        %v930 = vsel %vm631, %v926, %v928
        %v934 = vld [vmem:[%s4] sm:$0xf]
        %vm935 = vcmask 588800
        %v937 = vsel %vm935, %v934, 0
        %939 = vmatprep.subr.mxu0 %v837
        %940 = vmatpush1.msra.mxu0 %v842
        %941 = vmatprep.subr.mxu0 %v853
        %942 = vmatpush1.msra.mxu0 %v852
        %943 = vmatprep.subr.mxu0 %v864
        %944 = vmatpush1.msra.mxu0 %v863
        %945 = vmatprep.subr.mxu0 %v875
        %946 = vmatpush1.msra.mxu0 %v874
        %947 = vmatprep.subr.mxu0 %v886
        %948 = vmatpush1.msra.mxu0 %v885
        %949 = vmatprep.subr.mxu0 %v897
        %950 = vmatpush1.msra.mxu0 %v896
        %951 = vmatprep.subr.mxu0 %v908
        %952 = vmatpush1.msra.mxu0 %v907
        %953 = vmatprep.subr.mxu0 %v919
        %954 = vmatpush1.msra.mxu0 %v918
        %955 = vmatprep.subr.mxu0 %v930
        %956 = vmatpush1.msra.mxu0 %v929
        %957 = vmatprep.subr.mxu0 0.0
        %958 = vmatpush1.msra.mxu0 0.0
        %959 = vmatprep.subr.mxu0 0.0
        %960 = vmatpush1.msra.mxu0 0.0
        %961 = vmatprep.subr.mxu0 0.0
        %962 = vmatpush1.msra.mxu0 0.0
        %963 = vmatprep.subr.mxu0 0.0
        %964 = vmatpush1.msra.mxu0 0.0
        %965 = vmatprep.subr.mxu0 0.0
        %966 = vmatpush1.msra.mxu0 0.0
        %967 = vmatprep.subr.mxu0 0.0
        %968 = vmatpush1.msra.mxu0 0.0
        %969 = vmatprep.subr.mxu0 0.0
        %970 = vmatpush1.msra.mxu0 0.0
        %971 = vmatprep.subr.mxu0 0.0
        %972 = vmatpush1.msra.mxu0 0.0
        %973 = vmatprep.subr.mxu0 0.0
        %974 = vmatpush1.msra.mxu0 0.0
        %975 = vmatprep.subr.mxu0 0.0
        %976 = vmatpush1.msra.mxu0 0.0
        %977 = vmatprep.subr.mxu0 0.0
        %978 = vmatpush1.msra.mxu0 0.0
        %979 = vmatprep.subr.mxu0 0.0
        %980 = vmatpush1.msra.mxu0 0.0
        %981 = vmatprep.subr.mxu0 0.0
        %982 = vmatpush1.msra.mxu0 0.0
        %983 = vmatprep.subr.mxu0 0.0
        %984 = vmatpush1.msra.mxu0 0.0
        %985 = vmatprep.subr.mxu0 0.0
        %986 = vmatpush1.msra.mxu0 0.0
        %987 = vmatprep.subr.mxu0 0.0
        %988 = vmatpush1.msra.mxu0 0.0
        %989 = vmatprep.subr.mxu0 0.0
        %990 = vmatpush1.msra.mxu0 0.0
        %991 = vmatprep.subr.mxu0 0.0
        %992 = vmatpush1.msra.mxu0 0.0
        %993 = vmatprep.subr.mxu0 0.0
        %994 = vmatpush1.msra.mxu0 0.0
        %995 = vmatprep.subr.mxu0 0.0
        %996 = vmatpush1.msra.mxu0 0.0
        %997 = vmatprep.subr.mxu0 0.0
        %998 = vmatpush1.msra.mxu0 0.0
        %999 = vmatprep.subr.mxu0 0.0
        %1000 = vmatpush1.msra.mxu0 0.0
        %1001 = vmatprep.subr.mxu0 0.0
        %1002 = vmatpush1.msra.mxu0 0.0
        %1003 = vmatprep.mubr.f32.mxu0 0.0
        %1004 = vmatmul.mubr.f32.gmra.mrb[0].mxu0 %v937
        %v1005 = vpop.f32.mrb[0].mxu0
        %v1006 = vadd.f32 0.0, %v1005
        %v1007 = vpop.f32.mrb[0].mxu0
        %v1008 = vadd.f32 0.0, %v1007
        %1009 = vdwg.mxu0
        %1010 = vmatprep.subr.mxu0 0.0
        %1011 = vmatpush1.msra.mxu0 %v843
        %1012 = vmatprep.subr.mxu0 0.0
        %1013 = vmatpush1.msra.mxu0 %v851
        %1014 = vmatprep.subr.mxu0 0.0
        %1015 = vmatpush1.msra.mxu0 %v862
        %1016 = vmatprep.subr.mxu0 0.0
        %1017 = vmatpush1.msra.mxu0 %v873
        %1018 = vmatprep.subr.mxu0 0.0
        %1019 = vmatpush1.msra.mxu0 %v884
        %1020 = vmatprep.subr.mxu0 0.0
        %1021 = vmatpush1.msra.mxu0 %v895
        %1022 = vmatprep.subr.mxu0 0.0
        %1023 = vmatpush1.msra.mxu0 %v906
        %1024 = vmatprep.subr.mxu0 0.0
        %1025 = vmatpush1.msra.mxu0 %v917
        %1026 = vmatprep.subr.mxu0 0.0
        %1027 = vmatpush1.msra.mxu0 %v928
        %1028 = vmatprep.subr.mxu0 0.0
        %1029 = vmatpush1.msra.mxu0 0.0
        %1030 = vmatprep.subr.mxu0 0.0
        %1031 = vmatpush1.msra.mxu0 0.0
        %1032 = vmatprep.subr.mxu0 0.0
        %1033 = vmatpush1.msra.mxu0 0.0
        %1034 = vmatprep.subr.mxu0 0.0
        %1035 = vmatpush1.msra.mxu0 0.0
        %1036 = vmatprep.subr.mxu0 0.0
        %1037 = vmatpush1.msra.mxu0 0.0
        %1038 = vmatprep.subr.mxu0 0.0
        %1039 = vmatpush1.msra.mxu0 0.0
        %1040 = vmatprep.subr.mxu0 0.0
        %1041 = vmatpush1.msra.mxu0 0.0
        %1042 = vmatprep.subr.mxu0 0.0
        %1043 = vmatpush1.msra.mxu0 0.0
        %1044 = vmatprep.subr.mxu0 0.0
        %1045 = vmatpush1.msra.mxu0 0.0
        %1046 = vmatprep.subr.mxu0 0.0
        %1047 = vmatpush1.msra.mxu0 0.0
        %1048 = vmatprep.subr.mxu0 0.0
        %1049 = vmatpush1.msra.mxu0 0.0
        %1050 = vmatprep.subr.mxu0 0.0
        %1051 = vmatpush1.msra.mxu0 0.0
        %1052 = vmatprep.subr.mxu0 0.0
        %1053 = vmatpush1.msra.mxu0 0.0
        %1054 = vmatprep.subr.mxu0 0.0
        %1055 = vmatpush1.msra.mxu0 0.0
        %1056 = vmatprep.subr.mxu0 0.0
        %1057 = vmatpush1.msra.mxu0 0.0
        %1058 = vmatprep.subr.mxu0 0.0
        %1059 = vmatpush1.msra.mxu0 0.0
        %1060 = vmatprep.subr.mxu0 0.0
        %1061 = vmatpush1.msra.mxu0 0.0
        %1062 = vmatprep.subr.mxu0 0.0
        %1063 = vmatpush1.msra.mxu0 0.0
        %1064 = vmatprep.subr.mxu0 0.0
        %1065 = vmatpush1.msra.mxu0 0.0
        %1066 = vmatprep.subr.mxu0 0.0
        %1067 = vmatpush1.msra.mxu0 0.0
        %1068 = vmatprep.subr.mxu0 0.0
        %1069 = vmatpush1.msra.mxu0 0.0
        %1070 = vmatprep.subr.mxu0 0.0
        %1071 = vmatpush1.msra.mxu0 0.0
        %1072 = vmatprep.subr.mxu0 0.0
        %1073 = vmatpush1.msra.mxu0 0.0
        %1074 = vmatprep.mubr.f32.mxu0 0.0
        %1075 = vmatmul.mubr.f32.gmra.mrb[0].mxu0 %v937
        %v1076 = vpop.f32.mrb[0].mxu0
        %v1077 = vadd.f32 0.0, %v1076
        %v1078 = vpop.f32.mrb[0].mxu0
        %1079 = vdwg.mxu0
        %v1080 = vsub.f32 %v444, %v1006
        %v1081 = vsub.f32 %v446, %v1008
        %v1082 = vsub.f32 %v515, %v1077
        %v1083 = vld [vmem:[%s2] sm:$0xff]
        %v1084 = vld [vmem:[%s2 + $0x8] sm:$0xff]
        %v1085 = vld [vmem:[%s2 + $0x10] sm:$0xff]
        %v1086 = vld [vmem:[%s2 + $0x18] sm:$0xff]
        %v1087 = vld [vmem:[%s2 + $0x20] sm:$0xff]
        %v1088 = vld [vmem:[%s2 + $0x28] sm:$0xff]
        %v1089 = vld [vmem:[%s2 + $0x30] sm:$0xff]
        %v1090 = vld [vmem:[%s2 + $0x38] sm:$0xff]
        %v1091 = vld [vmem:[%s2 + $0x40] sm:$0xff]
        %v1092 = vld [vmem:[%s2 + $0x48] sm:$0xff]
        %v1093 = vld [vmem:[%s2 + $0x50] sm:$0xff]
        %v1094 = vld [vmem:[%s2 + $0x58] sm:$0xff]
        %v1095 = vld [vmem:[%s2 + $0x60] sm:$0xff]
        %v1096 = vld [vmem:[%s2 + $0x68] sm:$0xff]
        %v1097 = vld [vmem:[%s2 + $0x70] sm:$0xff]
        %v1098 = vld [vmem:[%s2 + $0x78] sm:$0xff]
        %v1099 = vld [vmem:[%s2 + $0x80] sm:$0xff]
        %v1100 = vld [vmem:[%s2 + $0x88] sm:$0xff]
        %v1101 = vld [vmem:[%s2 + $0x90] sm:$0xff]
        %v1102 = vld [vmem:[%s2 + $0x98] sm:$0xff]
        %v1103 = vld [vmem:[%s2 + $0xa0] sm:$0xff]
        %v1104 = vld [vmem:[%s2 + $0xa8] sm:$0xff]
        %v1105 = vld [vmem:[%s2 + $0xb0] sm:$0xff]
        %v1106 = vld [vmem:[%s2 + $0xb8] sm:$0xff]
        %v1107 = vld [vmem:[%s2 + $0xc0] sm:$0xff]
        %v1108 = vld [vmem:[%s2 + $0xc8] sm:$0xff]
        %v1109 = vld [vmem:[%s2 + $0xd0] sm:$0xff]
        %v1110 = vld [vmem:[%s2 + $0xd8] sm:$0xff]
        %v1111 = vld [vmem:[%s2 + $0xe0] sm:$0xff]
        %v1112 = vld [vmem:[%s2 + $0xe8] sm:$0xff]
        %v1113 = vld [vmem:[%s2 + $0xf0] sm:$0xff]
        %v1114 = vld [vmem:[%s2 + $0xf8] sm:$0xff]
        %v1115 = vld [vmem:[%s2 + $0x100] sm:$0xff]
        %v1116 = vld [vmem:[%s2 + $0x108] sm:$0xff]
        %v1117 = vld [vmem:[%s2 + $0x110] sm:$0xff]
        %v1118 = vld [vmem:[%s2 + $0x118] sm:$0xff]
        %v1119 = vld [vmem:[%s2 + $0x120] sm:$0xff]
        %v1120 = vld [vmem:[%s2 + $0x128] sm:$0xff]
        %v1121 = vld [vmem:[%s2 + $0x130] sm:$0xff]
        %v1122 = vld [vmem:[%s2 + $0x138] sm:$0xff]
        %v1123 = vld [vmem:[%s2 + $0x140] sm:$0xff]
        %v1124 = vld [vmem:[%s2 + $0x148] sm:$0xff]
        %v1125 = vld [vmem:[%s2 + $0x150] sm:$0xff]
        %v1126 = vld [vmem:[%s2 + $0x158] sm:$0xff]
        %v1127 = vld [vmem:[%s2 + $0x160] sm:$0xff]
        %v1128 = vld [vmem:[%s2 + $0x168] sm:$0xff]
        %v1129 = vld [vmem:[%s2 + $0x170] sm:$0xff]
        %v1130 = vld [vmem:[%s2 + $0x178] sm:$0xff]
        %v1131 = vld [vmem:[%s2 + $0x180] sm:$0xff]
        %v1132 = vld [vmem:[%s2 + $0x188] sm:$0xff]
        %v1133 = vld [vmem:[%s2 + $0x190] sm:$0xff]
        %v1134 = vld [vmem:[%s2 + $0x198] sm:$0xff]
        %v1135 = vld [vmem:[%s2 + $0x1a0] sm:$0xff]
        %v1136 = vld [vmem:[%s2 + $0x1a8] sm:$0xff]
        %v1137 = vld [vmem:[%s2 + $0x1b0] sm:$0xff]
        %v1138 = vld [vmem:[%s2 + $0x1b8] sm:$0xff]
        %v1139 = vld [vmem:[%s2 + $0x1c0] sm:$0xff]
        %v1140 = vld [vmem:[%s2 + $0x1c8] sm:$0xff]
        %v1141 = vld [vmem:[%s2 + $0x1d0] sm:$0xff]
        %v1142 = vld [vmem:[%s2 + $0x1d8] sm:$0xff]
        %v1143 = vld [vmem:[%s2 + $0x1e0] sm:$0xff]
        %v1144 = vld [vmem:[%s2 + $0x1e8] sm:$0xff]
        %v1145 = vld [vmem:[%s2 + $0x1f0] sm:$0xff]
        %v1146 = vld [vmem:[%s2 + $0x1f8] sm:$0xff]
        %v1147 = vld [vmem:[%s2 + $0x200] sm:$0xff]
        %v1148 = vld [vmem:[%s2 + $0x208] sm:$0xff]
        %v1149 = vld [vmem:[%s2 + $0x210] sm:$0xff]
        %v1150 = vld [vmem:[%s2 + $0x218] sm:$0xff]
        %v1151 = vld [vmem:[%s2 + $0x220] sm:$0xff]
        %v1152 = vld [vmem:[%s2 + $0x228] sm:$0xff]
        %v1153 = vld [vmem:[%s2 + $0x230] sm:$0xff]
        %v1154 = vld [vmem:[%s2 + $0x238] sm:$0xff]
        %vm1155 = vcmask 261120
        %v1157 = vsel %vm1155, %v1082, 0
        %1159 = vmatprep.subr.mxu0 %v1084
        %1160 = vmatpush1.msra.mxu0 %v1083
        %1161 = vmatprep.subr.mxu0 %v1086
        %1162 = vmatpush1.msra.mxu0 %v1085
        %1163 = vmatprep.subr.mxu0 %v1088
        %1164 = vmatpush1.msra.mxu0 %v1087
        %1165 = vmatprep.subr.mxu0 %v1090
        %1166 = vmatpush1.msra.mxu0 %v1089
        %1167 = vmatprep.subr.mxu0 %v1092
        %1168 = vmatpush1.msra.mxu0 %v1091
        %1169 = vmatprep.subr.mxu0 %v1094
        %1170 = vmatpush1.msra.mxu0 %v1093
        %1171 = vmatprep.subr.mxu0 %v1096
        %1172 = vmatpush1.msra.mxu0 %v1095
        %1173 = vmatprep.subr.mxu0 %v1098
        %1174 = vmatpush1.msra.mxu0 %v1097
        %1175 = vmatprep.subr.mxu0 %v1100
        %1176 = vmatpush1.msra.mxu0 %v1099
        %1177 = vmatprep.subr.mxu0 %v1102
        %1178 = vmatpush1.msra.mxu0 %v1101
        %1179 = vmatprep.subr.mxu0 %v1104
        %1180 = vmatpush1.msra.mxu0 %v1103
        %1181 = vmatprep.subr.mxu0 %v1106
        %1182 = vmatpush1.msra.mxu0 %v1105
        %1183 = vmatprep.subr.mxu0 %v1108
        %1184 = vmatpush1.msra.mxu0 %v1107
        %1185 = vmatprep.subr.mxu0 %v1110
        %1186 = vmatpush1.msra.mxu0 %v1109
        %1187 = vmatprep.subr.mxu0 %v1112
        %1188 = vmatpush1.msra.mxu0 %v1111
        %1189 = vmatprep.subr.mxu0 %v1114
        %1190 = vmatpush1.msra.mxu0 %v1113
        %1191 = vmatprep.subr.mxu0 %v1116
        %1192 = vmatpush1.msra.mxu0 %v1115
        %1193 = vmatprep.subr.mxu0 %v1118
        %1194 = vmatpush1.msra.mxu0 %v1117
        %1195 = vmatprep.subr.mxu0 %v1120
        %1196 = vmatpush1.msra.mxu0 %v1119
        %1197 = vmatprep.subr.mxu0 %v1122
        %1198 = vmatpush1.msra.mxu0 %v1121
        %1199 = vmatprep.subr.mxu0 %v1124
        %1200 = vmatpush1.msra.mxu0 %v1123
        %1201 = vmatprep.subr.mxu0 %v1126
        %1202 = vmatpush1.msra.mxu0 %v1125
        %1203 = vmatprep.subr.mxu0 %v1128
        %1204 = vmatpush1.msra.mxu0 %v1127
        %1205 = vmatprep.subr.mxu0 %v1130
        %1206 = vmatpush1.msra.mxu0 %v1129
        %1207 = vmatprep.subr.mxu0 %v1132
        %1208 = vmatpush1.msra.mxu0 %v1131
        %1209 = vmatprep.subr.mxu0 %v1134
        %1210 = vmatpush1.msra.mxu0 %v1133
        %1211 = vmatprep.subr.mxu0 %v1136
        %1212 = vmatpush1.msra.mxu0 %v1135
        %1213 = vmatprep.subr.mxu0 %v1138
        %1214 = vmatpush1.msra.mxu0 %v1137
        %1215 = vmatprep.subr.mxu0 %v1140
        %1216 = vmatpush1.msra.mxu0 %v1139
        %1217 = vmatprep.subr.mxu0 %v1142
        %1218 = vmatpush1.msra.mxu0 %v1141
        %1219 = vmatprep.subr.mxu0 %v1144
        %1220 = vmatpush1.msra.mxu0 %v1143
        %1221 = vmatprep.subr.mxu0 %v1146
        %1222 = vmatpush1.msra.mxu0 %v1145
        %1223 = vmatprep.mubr.f32.mxu0 %v1081
        %1224 = vmatmul.mubr.f32.gmra.mrb[0].mxu0 %v1080
        %v1225 = vpop.f32.mrb[0].mxu0
        %v1226 = vadd.f32 0.0, %v1225
        %v1227 = vpop.f32.mrb[0].mxu0
        %v1228 = vadd.f32 0.0, %v1227
        %1229 = vdwg.mxu0
        %1230 = vmatprep.subr.mxu0 %v1148
        %1231 = vmatpush1.msra.mxu0 %v1147
        %1232 = vmatprep.subr.mxu0 %v1150
        %1233 = vmatpush1.msra.mxu0 %v1149
        %1234 = vmatprep.subr.mxu0 %v1152
        %1235 = vmatpush1.msra.mxu0 %v1151
        %1236 = vmatprep.subr.mxu0 %v1154
        %1237 = vmatpush1.msra.mxu0 %v1153
        %1238 = vmatprep.subr.mxu0 0.0
        %1239 = vmatpush1.msra.mxu0 0.0
        %1240 = vmatprep.subr.mxu0 0.0
        %1241 = vmatpush1.msra.mxu0 0.0
        %1242 = vmatprep.subr.mxu0 0.0
        %1243 = vmatpush1.msra.mxu0 0.0
        %1244 = vmatprep.subr.mxu0 0.0
        %1245 = vmatpush1.msra.mxu0 0.0
        %1246 = vmatprep.subr.mxu0 0.0
        %1247 = vmatpush1.msra.mxu0 0.0
        %1248 = vmatprep.subr.mxu0 0.0
        %1249 = vmatpush1.msra.mxu0 0.0
        %1250 = vmatprep.subr.mxu0 0.0
        %1251 = vmatpush1.msra.mxu0 0.0
        %1252 = vmatprep.subr.mxu0 0.0
        %1253 = vmatpush1.msra.mxu0 0.0
        %1254 = vmatprep.subr.mxu0 0.0
        %1255 = vmatpush1.msra.mxu0 0.0
        %1256 = vmatprep.subr.mxu0 0.0
        %1257 = vmatpush1.msra.mxu0 0.0
        %1258 = vmatprep.subr.mxu0 0.0
        %1259 = vmatpush1.msra.mxu0 0.0
        %1260 = vmatprep.subr.mxu0 0.0
        %1261 = vmatpush1.msra.mxu0 0.0
        %1262 = vmatprep.subr.mxu0 0.0
        %1263 = vmatpush1.msra.mxu0 0.0
        %1264 = vmatprep.subr.mxu0 0.0
        %1265 = vmatpush1.msra.mxu0 0.0
        %1266 = vmatprep.subr.mxu0 0.0
        %1267 = vmatpush1.msra.mxu0 0.0
        %1268 = vmatprep.subr.mxu0 0.0
        %1269 = vmatpush1.msra.mxu0 0.0
        %1270 = vmatprep.subr.mxu0 0.0
        %1271 = vmatpush1.msra.mxu0 0.0
        %1272 = vmatprep.subr.mxu0 0.0
        %1273 = vmatpush1.msra.mxu0 0.0
        %1274 = vmatprep.subr.mxu0 0.0
        %1275 = vmatpush1.msra.mxu0 0.0
        %1276 = vmatprep.subr.mxu0 0.0
        %1277 = vmatpush1.msra.mxu0 0.0
        %1278 = vmatprep.subr.mxu0 0.0
        %1279 = vmatpush1.msra.mxu0 0.0
        %1280 = vmatprep.subr.mxu0 0.0
        %1281 = vmatpush1.msra.mxu0 0.0
        %1282 = vmatprep.subr.mxu0 0.0
        %1283 = vmatpush1.msra.mxu0 0.0
        %1284 = vmatprep.subr.mxu0 0.0
        %1285 = vmatpush1.msra.mxu0 0.0
        %1286 = vmatprep.subr.mxu0 0.0
        %1287 = vmatpush1.msra.mxu0 0.0
        %1288 = vmatprep.subr.mxu0 0.0
        %1289 = vmatpush1.msra.mxu0 0.0
        %1290 = vmatprep.subr.mxu0 0.0
        %1291 = vmatpush1.msra.mxu0 0.0
        %1292 = vmatprep.subr.mxu0 0.0
        %1293 = vmatpush1.msra.mxu0 0.0
        %1294 = vmatprep.mubr.f32.mxu0 0.0
        %1295 = vmatmul.mubr.f32.gmra.mrb[0].mxu0 %v1157
        %v1296 = vpop.f32.mrb[0].mxu0
        %v1297 = vadd.f32 %v1226, %v1296
        %v1298 = vpop.f32.mrb[0].mxu0
        %v1299 = vadd.f32 %v1228, %v1298
        %1300 = vdwg.mxu0
        %v1303 = vcombine.low %v1297, %v1299
        %1305 = vst [vmem:[%s271] sm:$0xff] %v1303
        %s1306 = sand.u32 %s181, 1
        %s1307 = scalar_lea.sflag [#allocation3], %s1306
        %s1308 = sand.u32 %s181, 1
        %s1309 = smul.addr %s1308, 8
        %s1310 = scalar_lea.vmem [#allocation2], %s1309
        // Predicated region
        $region49: #{tpu_custom_call.1} parent=47 // pred_check
          %p1311 = pneg %p191
        $region50: #{tpu_custom_call.1} parent=47 // pred_check_branch
          %1313 = sbr.rel (%p1311) target = $region52
        $region51: #{tpu_custom_call.1} parent=47 // pred_region
          %s1315 = ssub.s32 128, 128
          %1316 = vsyncadd %s1307, %s1315
          %s1317 = smul.addr %s21, 2
          %s1318 = smul.addr %s1317, 64
          %s1319 = scalar_lea.hbm %s7, %s1318
          %s1321 = sshll.u32 %s1310, 4
          %s1322 = int_to_ptr.vmem [resolvable:$true] %s1321
          %1324 = dma.vmem_to_hbm [thread:$0]  %s1322, 128, %s1319, %s1307
        $region52: #{tpu_custom_call.1} parent=47 // pred_fallthru
          _
      $region48: #{tpu_custom_call.1} parent=5 // pred_fallthru
        _
      %p1325 = scmp.le.s32.totalorder 2, %s16
      // Predicated region
      $region53: #{tpu_custom_call.1} parent=5 // pred_check
        %p1326 = pneg %p1325
      $region54: #{tpu_custom_call.1} parent=5 // pred_check_branch
        %1328 = sbr.rel (%p1326) target = $region56
      $region55: #{tpu_custom_call.1} parent=5 // pred_region
        %s1329 = ssub.s32 %s16, 2
        // Predicated region
        $region57: #{tpu_custom_call.1} parent=55 // pred_check
          %p1330 = pneg %p197
        $region58: #{tpu_custom_call.1} parent=55 // pred_check_branch
          %1332 = sbr.rel (%p1330) target = $region60
        $region59: #{tpu_custom_call.1} parent=55 // pred_region
          %s1333 = sand.u32 %s182, 1
          %s1334 = scalar_lea.sflag [#allocation3], %s1333
          %s1335 = sand.u32 %s182, 1
          %s1336 = smul.addr %s1335, 8
          %s1337 = scalar_lea.vmem [#allocation2], %s1336
          %1338 = dma.done %s1334, 128
        $region60: #{tpu_custom_call.1} parent=55 // pred_fallthru
          _
      $region56: #{tpu_custom_call.1} parent=5 // pred_fallthru
        _
    $region6: #{tpu_custom_call.1} parent=1 // loop_footer
      %s20 = sadd.s32 1, %s16
    $region7: #{tpu_custom_call.1} parent=1 // loop_footer_branch
      %15 = sbr.rel target = $region3
    $region8: #{tpu_custom_call.1} parent=1 // loop_exit
      _
    %1339 = vsyncpa [#allocation3], 1
    %s1340 = scalar_lea.sflag [#allocation3], 1
    %1341 = vsyncpa %s1340, 1

</llo_original>
